<compile_context>
chip_gen: v5e
topology: v5e:2x2
jax: 0.10.0
libtpu: 0.0.40
codegen_flags: <defaults>
</compile_context>

<pallas_src>
import jax
import jax.numpy as jnp
from jax.experimental import pallas as pl
from jax.experimental.pallas import tpu as pltpu


# ----------------------------- kernel ---------------------------------------

def _fwd_kernel(uA_ref, uB_ref, uC_ref, spk_ref,
                w_shA_ref, w_shB_ref, w_shC_ref, vecS_ref,
                w1a_ref, w1b_ref, w2_ref,
                wp1ACB_ref, wp1S_ref, wp2_ref, wp3_ref, wp4_ref, wp5_ref,
                biasv_ref, out_ref):
    f32 = jnp.float32
    bf16 = jnp.bfloat16

    tb = uA_ref.shape[0]
    S = vecS_ref.shape[1]
    P = w1a_ref.shape[1]
    H1 = wp1ACB_ref.shape[1]
    H2 = wp2_ref.shape[1]
    H3 = wp3_ref.shape[1]
    H4 = wp4_ref.shape[1]
    c_pad = wp5_ref.shape[1]

    vec = vecS_ref[...]     # (9, S): [b_shA, b_shB, b_shC, bnA_s, bnA_b, bnB_s, bnB_b, bnC_s, bnC_b]
    bias = biasv_ref[...]   # (7, Wmax): [b1, b2, bp1, bp2, bp3, bp4, bp5] zero-padded to Wmax

    def share(u_ref, w_ref, b_row, s_row, t_row):
        # Linear (bf16 MXU, f32 acc) -> ReLU -> BatchNorm(eval affine), all f32 after the dot.
        h = jnp.dot(u_ref[...].astype(bf16), w_ref[...],
                    preferred_element_type=f32) + vec[b_row:b_row + 1, :]
        return jnp.maximum(h, 0.0) * vec[s_row:s_row + 1, :] + vec[t_row:t_row + 1, :]

    shA = share(uA_ref, w_shA_ref, 0, 3, 4)
    shB = share(uB_ref, w_shB_ref, 1, 5, 6)
    shC = share(uC_ref, w_shC_ref, 2, 7, 8)

    # collabrative_gate_1 projections: batch-stack A/B/C -> 2 dots instead of 6.
    sh_all = jnp.concatenate([shA, shB, shC], axis=0).astype(bf16)        # (3tb, S)
    p_all = jnp.dot(sh_all, w1a_ref[...], preferred_element_type=f32)     # (3tb, P)
    q_all = jnp.dot(sh_all, w1b_ref[...], preferred_element_type=f32)     # (3tb, P)
    pA, pB, pC = p_all[0:tb], p_all[tb:2 * tb], p_all[2 * tb:3 * tb]
    qA, qB, qC = q_all[0:tb], q_all[tb:2 * tb], q_all[2 * tb:3 * tb]

    b1 = bias[0:1, :P]
    b2 = bias[1:2, :S]

    def softmax(x):
        m = jnp.max(x, axis=-1, keepdims=True)
        e = jnp.exp(x - m)
        return e * pl.reciprocal(jnp.sum(e, axis=-1, keepdims=True), approx=True)

    # attention sums for A, C, B (order matches the pred_module cat order).
    sA = softmax(pA + qC + b1) + softmax(pA + qB + b1)   # aggregator(A, C, B)
    sC = softmax(pC + qA + b1) + softmax(pC + qB + b1)   # aggregator(C, A, B)
    sB = softmax(pB + qA + b1) + softmax(pB + qC + b1)   # aggregator(B, A, C)

    # collabrative_gate_2: batch-stack -> 1 dot instead of 3.
    s_all = jnp.concatenate([sA, sC, sB], axis=0).astype(bf16)            # (3tb, P)
    g_all = softmax(jnp.dot(s_all, w2_ref[...], preferred_element_type=f32) + b2)

    upA = shA * g_all[0:tb]
    upC = shC * g_all[tb:2 * tb]
    upB = shB * g_all[2 * tb:3 * tb]

    # pred_module layer 1: lane-concat upA|upC|upB -> one (tb,3S)@(3S,H1) dot;
    # speaker one-hot term kept as a separate small dot. BatchNorms already folded.
    up_cat = jnp.concatenate([upA, upC, upB], axis=1).astype(bf16)        # (tb, 3S)
    h = (jnp.dot(up_cat, wp1ACB_ref[...], preferred_element_type=f32)
         + jnp.dot(spk_ref[...].astype(bf16), wp1S_ref[...], preferred_element_type=f32)
         + bias[2:3, :H1])
    h = jnp.maximum(h, 0.0)
    h = jnp.maximum(jnp.dot(h.astype(bf16), wp2_ref[...],
                            preferred_element_type=f32) + bias[3:4, :H2], 0.0)
    h = jnp.maximum(jnp.dot(h.astype(bf16), wp3_ref[...],
                            preferred_element_type=f32) + bias[4:5, :H3], 0.0)
    h = jnp.maximum(jnp.dot(h.astype(bf16), wp4_ref[...],
                            preferred_element_type=f32) + bias[5:6, :H4], 0.0)
    out_ref[...] = (jnp.dot(h.astype(bf16), wp5_ref[...],
                            preferred_element_type=f32)
                    + bias[6:7, :c_pad]).astype(out_ref.dtype)


_ORDER = ("w_shA", "w_shB", "w_shC", "vecS",
          "w1a", "w1b", "w2",
          "wp1ACB", "wp1S", "wp2", "wp3", "wp4", "wp5", "biasv")


def triple_mode_forward(uA, uB, uC, speaker_embedding, kp, *, num_classes, tb=None):
    """Pallas forward. Batch-tiled 1-D grid; all params replicated per tile.

    tb defaults to min(B, 256): a single block for small batches, otherwise
    256-row tiles (fills the 256-row MXU on v6e/v7x, keeps grid >= 2 so the
    "parallel" axis shards across v7x's two TensorCores, and stays well inside
    the 32 MiB default scoped-VMEM even on v7x). On v5e, tb=128 is a good
    choice for large batches.
    """
    B = uA.shape[0]
    if tb is None:
        tb = B if (B <= 256 or B % 256 != 0) else 256
    assert B % tb == 0
    assert tb % 8 == 0 or tb == B, "tb should be sublane-aligned (multiple of 8)"
    c_pad = kp["wp5"].shape[1]   # lane-dense (padded) classifier width

    def tiled(a):
        return pl.BlockSpec((tb, a.shape[1]), lambda i: (i, 0))

    def rep(a):
        return pl.BlockSpec(a.shape, lambda i: (0, 0))

    in_specs = ([tiled(uA), tiled(uB), tiled(uC), tiled(speaker_embedding)]
                + [rep(kp[k]) for k in _ORDER])
    out_specs = pl.BlockSpec((tb, c_pad), lambda i: (i, 0))

    out = pl.pallas_call(
        _fwd_kernel,
        out_shape=jax.ShapeDtypeStruct((B, c_pad), jnp.float32),
        grid=(B // tb,),
        in_specs=in_specs,
        out_specs=out_specs,
        compiler_params=pltpu.CompilerParams(
            dimension_semantics=("parallel",)),   # shards across v7x's 2 TCs when grid > 1
    )(uA, uB, uC, speaker_embedding, *[kp[k] for k in _ORDER])
    return out[:, :num_classes]


# ------------------- deterministic parameter construction -------------------

def _linear_init(key, fan_in, fan_out):
    k1, k2 = jax.random.split(key)
    bound = 1.0 / float(fan_in) ** 0.5
    w = jax.random.uniform(k1, (fan_in, fan_out), jnp.float32, -bound, bound)
    b = jax.random.uniform(k2, (1, fan_out), jnp.float32, -bound, bound)
    return w, b


def _bn_affine(key, dim, eps=1e-5):
    # Deterministic, non-trivial "running stats" expressed as eval-mode affine.
    k1, k2, k3, k4 = jax.random.split(key, 4)
    gamma = 1.0 + 0.1 * jax.random.normal(k1, (1, dim), jnp.float32)
    beta = 0.1 * jax.random.normal(k2, (1, dim), jnp.float32)
    mean = 0.1 * jax.random.normal(k3, (1, dim), jnp.float32)
    var = 1.0 + 0.1 * jax.random.uniform(k4, (1, dim), jnp.float32)
    scale = gamma / jnp.sqrt(var + eps)
    shift = beta - mean * scale
    return scale, shift


def make_params(key, *, n_speaker, dA, dB, dC, S, P, num_classes):
    """Raw (unfolded) parameters mirroring the PyTorch module layout."""
    ks = jax.random.split(key, 17)
    R = {}
    R["w_shA"], R["b_shA"] = _linear_init(ks[0], dA, S)
    R["w_shB"], R["b_shB"] = _linear_init(ks[1], dB, S)
    R["w_shC"], R["b_shC"] = _linear_init(ks[2], dC, S)
    R["bnA_s"], R["bnA_b"] = _bn_affine(ks[3], S)
    R["bnB_s"], R["bnB_b"] = _bn_affine(ks[4], S)
    R["bnC_s"], R["bnC_b"] = _bn_affine(ks[5], S)
    R["w1"], R["b1"] = _linear_init(ks[6], 2 * S, P)      # collabrative_gate_1
    R["w2"], R["b2"] = _linear_init(ks[7], P, S)          # collabrative_gate_2
    H1, H2, H3, H4 = 2 * S, S, 512, 128                   # pred_module dims
    R["wp1"], R["bp1"] = _linear_init(ks[8], 3 * S + n_speaker, H1)
    R["bn2_s"], R["bn2_b"] = _bn_affine(ks[9], H1)
    R["wp2"], R["bp2"] = _linear_init(ks[10], H1, H2)
    R["bn3_s"], R["bn3_b"] = _bn_affine(ks[11], H2)
    R["wp3"], R["bp3"] = _linear_init(ks[12], H2, H3)
    R["bn4_s"], R["bn4_b"] = _bn_affine(ks[13], H3)
    R["wp4"], R["bp4"] = _linear_init(ks[14], H3, H4)
    R["bn5_s"], R["bn5_b"] = _bn_affine(ks[15], H4)
    R["wp5"], R["bp5"] = _linear_init(ks[16], H4, num_classes)
    return R


def fold_params(R, *, c_pad=128):
    """Host-side algebraic folds + bf16 weight casts feeding the kernel."""
    bf16 = jnp.bfloat16
    S = R["w_shA"].shape[1]
    kp = {"w_shA": R["w_shA"].astype(bf16),
          "w_shB": R["w_shB"].astype(bf16),
          "w_shC": R["w_shC"].astype(bf16)}
    # Pack all width-S per-feature vectors into one replicated f32 block.
    kp["vecS"] = jnp.concatenate(
        [R["b_shA"], R["b_shB"], R["b_shC"],
         R["bnA_s"], R["bnA_b"], R["bnB_s"], R["bnB_b"], R["bnC_s"], R["bnC_b"]],
        axis=0)                                            # (9, S), f32
    kp["w1a"] = R["w1"][:S].astype(bf16)                   # split for cat(feA, feB)
    kp["w1b"] = R["w1"][S:].astype(bf16)
    kp["w2"] = R["w2"].astype(bf16)

    def fold(w, b, s, t):                                  # Linear -> BN(eval) fold
        return w * s, b * s + t

    wp1, bp1 = fold(R["wp1"], R["bp1"], R["bn2_s"], R["bn2_b"])
    kp["wp1ACB"] = wp1[:3 * S].astype(bf16)                # fused A|C|B slab
    kp["wp1S"] = wp1[3 * S:].astype(bf16)                  # speaker one-hot slab
    wp2, bp2 = fold(R["wp2"], R["bp2"], R["bn3_s"], R["bn3_b"])
    wp3, bp3 = fold(R["wp3"], R["bp3"], R["bn4_s"], R["bn4_b"])
    wp4, bp4 = fold(R["wp4"], R["bp4"], R["bn5_s"], R["bn5_b"])
    kp["wp2"], kp["wp3"], kp["wp4"] = wp2.astype(bf16), wp3.astype(bf16), wp4.astype(bf16)
    # Zero-pad classifier to 128 lanes -> unmasked stores; wrapper slices back.
    C = R["wp5"].shape[1]
    kp["wp5"] = jnp.pad(R["wp5"], ((0, 0), (0, c_pad - C))).astype(bf16)
    bp5 = jnp.pad(R["bp5"], ((0, 0), (0, c_pad - C)))
    # Pack the seven small bias rows into one replicated f32 block (fewer DMAs).
    rows = [R["b1"], R["b2"], bp1, bp2, bp3, bp4, bp5]
    wmax = max(r.shape[1] for r in rows)
    kp["biasv"] = jnp.concatenate(
        [jnp.pad(r, ((0, 0), (0, wmax - r.shape[1]))) for r in rows], axis=0)  # (7, wmax)
    return kp


# ----------------------------- reference ------------------------------------

def reference_forward(uA, uB, uC, spk, R):
    """Pure-JAX reference mirroring the PyTorch module (eval mode), unfolded f32."""
    def share(u, w, b, s, t):
        return jnp.maximum(u @ w + b, 0.0) * s + t

    shA = share(uA, R["w_shA"], R["b_shA"], R["bnA_s"], R["bnA_b"])
    shB = share(uB, R["w_shB"], R["b_shB"], R["bnB_s"], R["bnB_b"])
    shC = share(uC, R["w_shC"], R["b_shC"], R["bnC_s"], R["bnC_b"])

    def attention(fa, fb):
        return jax.nn.softmax(jnp.concatenate([fa, fb], axis=1) @ R["w1"] + R["b1"], axis=1)

    def aggregator(fa, fb, fc):
        return jax.nn.softmax((attention(fa, fb) + attention(fa, fc)) @ R["w2"] + R["b2"], axis=1)

    upA = shA * aggregator(shA, shC, shB)
    upC = shC * aggregator(shC, shA, shB)
    upB = shB * aggregator(shB, shA, shC)

    x = jnp.concatenate([upA, upC, upB, spk], axis=1)

    def lin_bn_relu(x, w, b, s, t):
        return jnp.maximum((x @ w + b) * s + t, 0.0)

    x = lin_bn_relu(x, R["wp1"], R["bp1"], R["bn2_s"], R["bn2_b"])
    x = lin_bn_relu(x, R["wp2"], R["bp2"], R["bn3_s"], R["bn3_b"])
    x = lin_bn_relu(x, R["wp3"], R["bp3"], R["bn4_s"], R["bn4_b"])
    x = lin_bn_relu(x, R["wp4"], R["bp4"], R["bn5_s"], R["bn5_b"])
    return x @ R["wp5"] + R["bp5"]


# ------------------------------- main ----------------------------------------

if __name__ == "__main__":
    # Small shapes consistent with the module structure.
    B = 16
    n_speaker = 8
    dA, dB, dC = 256, 128, 64     # input_embedding_A / _B / _C (audio)
    S, P = 128, 64                # shared_embedding, projection_embedding
    num_classes = 5

    key = jax.random.PRNGKey(0)
    kA, kB, kC, kS, kP = jax.random.split(key, 5)
    uA = jax.random.normal(kA, (B, dA), jnp.float32)
    uB = jax.random.normal(kB, (B, dB), jnp.float32)
    uC = jax.random.normal(kC, (B, dC), jnp.float32)
    speaker_ids = jax.random.randint(kS, (B,), 0, n_speaker)
    speaker_embedding = jax.nn.one_hot(speaker_ids, n_speaker, dtype=jnp.float32)

    raw = make_params(kP, n_speaker=n_speaker, dA=dA, dB=dB, dC=dC,
                      S=S, P=P, num_classes=num_classes)
    kp = fold_params(raw)

    out = triple_mode_forward(uA, uB, uC, speaker_embedding, kp,
                              num_classes=num_classes)
    out = jax.block_until_ready(out)

    ref = jax.block_until_ready(reference_forward(uA, uB, uC, speaker_embedding, raw))
    assert out.shape == (B, num_classes)
    max_err = float(jnp.max(jnp.abs(out - ref)))
    assert jnp.allclose(out, ref, rtol=2e-2, atol=2e-2), f"mismatch vs reference (max abs err {max_err})"

    print("KERNEL_OK")
</pallas_src>

<mosaic_0001>
module attributes {stable_mosaic.version = 11 : i64} {
  func.func @_fwd_kernel(%arg0: i32, %arg1: memref<16x256xf32, #tpu.memory_space<vmem>>, %arg2: memref<16x128xf32, #tpu.memory_space<vmem>>, %arg3: memref<16x64xf32, #tpu.memory_space<vmem>>, %arg4: memref<16x8xf32, #tpu.memory_space<vmem>>, %arg5: memref<256x128xbf16, #tpu.memory_space<vmem>>, %arg6: memref<128x128xbf16, #tpu.memory_space<vmem>>, %arg7: memref<64x128xbf16, #tpu.memory_space<vmem>>, %arg8: memref<9x128xf32, #tpu.memory_space<vmem>>, %arg9: memref<128x64xbf16, #tpu.memory_space<vmem>>, %arg10: memref<128x64xbf16, #tpu.memory_space<vmem>>, %arg11: memref<64x128xbf16, #tpu.memory_space<vmem>>, %arg12: memref<384x256xbf16, #tpu.memory_space<vmem>>, %arg13: memref<8x256xbf16, #tpu.memory_space<vmem>>, %arg14: memref<256x128xbf16, #tpu.memory_space<vmem>>, %arg15: memref<128x512xbf16, #tpu.memory_space<vmem>>, %arg16: memref<512x128xbf16, #tpu.memory_space<vmem>>, %arg17: memref<128x128xbf16, #tpu.memory_space<vmem>>, %arg18: memref<7x512xf32, #tpu.memory_space<vmem>>, %arg19: memref<16x128xf32, #tpu.memory_space<vmem>>) attributes {dimension_semantics = [#tpu.dimension_semantics<parallel>], iteration_bounds = array<i64: 1>, scalar_prefetch = 0 : i64, scratch_operands = 0 : i64, tpu.core_type = #tpu.core_type<tc>, window_params = [{transform_indices = @transform_0, window_bounds = array<i64: 16, 256>}, {transform_indices = @transform_1, window_bounds = array<i64: 16, 128>}, {transform_indices = @transform_2, window_bounds = array<i64: 16, 64>}, {transform_indices = @transform_3, window_bounds = array<i64: 16, 8>}, {pipeline_mode = #tpu.pipeline_mode<synchronous>, transform_indices = @transform_4, window_bounds = array<i64: 256, 128>}, {pipeline_mode = #tpu.pipeline_mode<synchronous>, transform_indices = @transform_5, window_bounds = array<i64: 128, 128>}, {pipeline_mode = #tpu.pipeline_mode<synchronous>, transform_indices = @transform_6, window_bounds = array<i64: 64, 128>}, {pipeline_mode = #tpu.pipeline_mode<synchronous>, transform_indices = @transform_7, window_bounds = array<i64: 9, 128>}, {pipeline_mode = #tpu.pipeline_mode<synchronous>, transform_indices = @transform_8, window_bounds = array<i64: 128, 64>}, {pipeline_mode = #tpu.pipeline_mode<synchronous>, transform_indices = @transform_9, window_bounds = array<i64: 128, 64>}, {pipeline_mode = #tpu.pipeline_mode<synchronous>, transform_indices = @transform_10, window_bounds = array<i64: 64, 128>}, {pipeline_mode = #tpu.pipeline_mode<synchronous>, transform_indices = @transform_11, window_bounds = array<i64: 384, 256>}, {pipeline_mode = #tpu.pipeline_mode<synchronous>, transform_indices = @transform_12, window_bounds = array<i64: 8, 256>}, {pipeline_mode = #tpu.pipeline_mode<synchronous>, transform_indices = @transform_13, window_bounds = array<i64: 256, 128>}, {pipeline_mode = #tpu.pipeline_mode<synchronous>, transform_indices = @transform_14, window_bounds = array<i64: 128, 512>}, {pipeline_mode = #tpu.pipeline_mode<synchronous>, transform_indices = @transform_15, window_bounds = array<i64: 512, 128>}, {pipeline_mode = #tpu.pipeline_mode<synchronous>, transform_indices = @transform_16, window_bounds = array<i64: 128, 128>}, {pipeline_mode = #tpu.pipeline_mode<synchronous>, transform_indices = @transform_17, window_bounds = array<i64: 7, 512>}, {transform_indices = @transform_18, window_bounds = array<i64: 16, 128>}]} {
    %c0 = arith.constant 0 : index
    %c0_0 = arith.constant 0 : index
    %0 = vector.load %arg8[%c0, %c0_0] : memref<9x128xf32, #tpu.memory_space<vmem>>, vector<9x128xf32>
    %c0_1 = arith.constant 0 : index
    %c0_2 = arith.constant 0 : index
    %1 = vector.load %arg18[%c0_1, %c0_2] : memref<7x512xf32, #tpu.memory_space<vmem>>, vector<7x512xf32>
    %c0_3 = arith.constant 0 : index
    %c0_4 = arith.constant 0 : index
    %2 = vector.load %arg1[%c0_3, %c0_4] : memref<16x256xf32, #tpu.memory_space<vmem>>, vector<16x256xf32>
    %3 = arith.truncf %2 : vector<16x256xf32> to vector<16x256xbf16>
    %c0_5 = arith.constant 0 : index
    %c0_6 = arith.constant 0 : index
    %4 = vector.load %arg5[%c0_5, %c0_6] : memref<256x128xbf16, #tpu.memory_space<vmem>>, vector<256x128xbf16>
    %cst = arith.constant dense<0.000000e+00> : vector<16x128xf32>
    %5 = tpu.matmul %3, %4, %cst {dimension_numbers = #tpu.dot_dimension_numbers<[1], [0], [0], [1], [0, 0, 1, 1], [], []>} : vector<16x256xbf16>, vector<256x128xbf16>, vector<16x128xf32> -> vector<16x128xf32>
    %6 = vector.extract_strided_slice %0 {offsets = [0, 0], sizes = [1, 128], strides = [1, 1]} : vector<9x128xf32> to vector<1x128xf32>
    %7 = vector.broadcast %6 : vector<1x128xf32> to vector<16x128xf32>
    %8 = arith.addf %5, %7 : vector<16x128xf32>
    %cst_7 = arith.constant 0.000000e+00 : f32
    %9 = vector.broadcast %cst_7 : f32 to vector<16x128xf32>
    %10 = arith.maximumf %8, %9 : vector<16x128xf32>
    %11 = vector.extract_strided_slice %0 {offsets = [3, 0], sizes = [1, 128], strides = [1, 1]} : vector<9x128xf32> to vector<1x128xf32>
    %12 = vector.broadcast %11 : vector<1x128xf32> to vector<16x128xf32>
    %13 = arith.mulf %10, %12 : vector<16x128xf32>
    %14 = vector.extract_strided_slice %0 {offsets = [4, 0], sizes = [1, 128], strides = [1, 1]} : vector<9x128xf32> to vector<1x128xf32>
    %15 = vector.broadcast %14 : vector<1x128xf32> to vector<16x128xf32>
    %16 = arith.addf %13, %15 : vector<16x128xf32>
    %c0_8 = arith.constant 0 : index
    %c0_9 = arith.constant 0 : index
    %17 = vector.load %arg2[%c0_8, %c0_9] : memref<16x128xf32, #tpu.memory_space<vmem>>, vector<16x128xf32>
    %18 = arith.truncf %17 : vector<16x128xf32> to vector<16x128xbf16>
    %c0_10 = arith.constant 0 : index
    %c0_11 = arith.constant 0 : index
    %19 = vector.load %arg6[%c0_10, %c0_11] : memref<128x128xbf16, #tpu.memory_space<vmem>>, vector<128x128xbf16>
    %cst_12 = arith.constant dense<0.000000e+00> : vector<16x128xf32>
    %20 = tpu.matmul %18, %19, %cst_12 {dimension_numbers = #tpu.dot_dimension_numbers<[1], [0], [0], [1], [0, 0, 1, 1], [], []>} : vector<16x128xbf16>, vector<128x128xbf16>, vector<16x128xf32> -> vector<16x128xf32>
    %21 = vector.extract_strided_slice %0 {offsets = [1, 0], sizes = [1, 128], strides = [1, 1]} : vector<9x128xf32> to vector<1x128xf32>
    %22 = vector.broadcast %21 : vector<1x128xf32> to vector<16x128xf32>
    %23 = arith.addf %20, %22 : vector<16x128xf32>
    %cst_13 = arith.constant 0.000000e+00 : f32
    %24 = vector.broadcast %cst_13 : f32 to vector<16x128xf32>
    %25 = arith.maximumf %23, %24 : vector<16x128xf32>
    %26 = vector.extract_strided_slice %0 {offsets = [5, 0], sizes = [1, 128], strides = [1, 1]} : vector<9x128xf32> to vector<1x128xf32>
    %27 = vector.broadcast %26 : vector<1x128xf32> to vector<16x128xf32>
    %28 = arith.mulf %25, %27 : vector<16x128xf32>
    %29 = vector.extract_strided_slice %0 {offsets = [6, 0], sizes = [1, 128], strides = [1, 1]} : vector<9x128xf32> to vector<1x128xf32>
    %30 = vector.broadcast %29 : vector<1x128xf32> to vector<16x128xf32>
    %31 = arith.addf %28, %30 : vector<16x128xf32>
    %c0_14 = arith.constant 0 : index
    %c0_15 = arith.constant 0 : index
    %32 = vector.load %arg3[%c0_14, %c0_15] : memref<16x64xf32, #tpu.memory_space<vmem>>, vector<16x64xf32>
    %33 = arith.truncf %32 : vector<16x64xf32> to vector<16x64xbf16>
    %c0_16 = arith.constant 0 : index
    %c0_17 = arith.constant 0 : index
    %34 = vector.load %arg7[%c0_16, %c0_17] : memref<64x128xbf16, #tpu.memory_space<vmem>>, vector<64x128xbf16>
    %cst_18 = arith.constant dense<0.000000e+00> : vector<16x128xf32>
    %35 = tpu.matmul %33, %34, %cst_18 {dimension_numbers = #tpu.dot_dimension_numbers<[1], [0], [0], [1], [0, 0, 1, 1], [], []>} : vector<16x64xbf16>, vector<64x128xbf16>, vector<16x128xf32> -> vector<16x128xf32>
    %36 = vector.extract_strided_slice %0 {offsets = [2, 0], sizes = [1, 128], strides = [1, 1]} : vector<9x128xf32> to vector<1x128xf32>
    %37 = vector.broadcast %36 : vector<1x128xf32> to vector<16x128xf32>
    %38 = arith.addf %35, %37 : vector<16x128xf32>
    %cst_19 = arith.constant 0.000000e+00 : f32
    %39 = vector.broadcast %cst_19 : f32 to vector<16x128xf32>
    %40 = arith.maximumf %38, %39 : vector<16x128xf32>
    %41 = vector.extract_strided_slice %0 {offsets = [7, 0], sizes = [1, 128], strides = [1, 1]} : vector<9x128xf32> to vector<1x128xf32>
    %42 = vector.broadcast %41 : vector<1x128xf32> to vector<16x128xf32>
    %43 = arith.mulf %40, %42 : vector<16x128xf32>
    %44 = vector.extract_strided_slice %0 {offsets = [8, 0], sizes = [1, 128], strides = [1, 1]} : vector<9x128xf32> to vector<1x128xf32>
    %45 = vector.broadcast %44 : vector<1x128xf32> to vector<16x128xf32>
    %46 = arith.addf %43, %45 : vector<16x128xf32>
    %47 = tpu.concatenate %16, %31, %46 in 0 : vector<16x128xf32>, vector<16x128xf32>, vector<16x128xf32> -> vector<48x128xf32>
    %48 = arith.truncf %47 : vector<48x128xf32> to vector<48x128xbf16>
    %c0_20 = arith.constant 0 : index
    %c0_21 = arith.constant 0 : index
    %49 = vector.load %arg9[%c0_20, %c0_21] : memref<128x64xbf16, #tpu.memory_space<vmem>>, vector<128x64xbf16>
    %cst_22 = arith.constant dense<0.000000e+00> : vector<48x64xf32>
    %50 = tpu.matmul %48, %49, %cst_22 {dimension_numbers = #tpu.dot_dimension_numbers<[1], [0], [0], [1], [0, 0, 1, 1], [], []>} : vector<48x128xbf16>, vector<128x64xbf16>, vector<48x64xf32> -> vector<48x64xf32>
    %c0_23 = arith.constant 0 : index
    %c0_24 = arith.constant 0 : index
    %51 = vector.load %arg10[%c0_23, %c0_24] : memref<128x64xbf16, #tpu.memory_space<vmem>>, vector<128x64xbf16>
    %cst_25 = arith.constant dense<0.000000e+00> : vector<48x64xf32>
    %52 = tpu.matmul %48, %51, %cst_25 {dimension_numbers = #tpu.dot_dimension_numbers<[1], [0], [0], [1], [0, 0, 1, 1], [], []>} : vector<48x128xbf16>, vector<128x64xbf16>, vector<48x64xf32> -> vector<48x64xf32>
    %53 = vector.extract_strided_slice %50 {offsets = [0, 0], sizes = [16, 64], strides = [1, 1]} : vector<48x64xf32> to vector<16x64xf32>
    %54 = vector.extract_strided_slice %50 {offsets = [16, 0], sizes = [16, 64], strides = [1, 1]} : vector<48x64xf32> to vector<16x64xf32>
    %55 = vector.extract_strided_slice %50 {offsets = [32, 0], sizes = [16, 64], strides = [1, 1]} : vector<48x64xf32> to vector<16x64xf32>
    %56 = vector.extract_strided_slice %52 {offsets = [0, 0], sizes = [16, 64], strides = [1, 1]} : vector<48x64xf32> to vector<16x64xf32>
    %57 = vector.extract_strided_slice %52 {offsets = [16, 0], sizes = [16, 64], strides = [1, 1]} : vector<48x64xf32> to vector<16x64xf32>
    %58 = vector.extract_strided_slice %52 {offsets = [32, 0], sizes = [16, 64], strides = [1, 1]} : vector<48x64xf32> to vector<16x64xf32>
    %59 = vector.extract_strided_slice %1 {offsets = [0, 0], sizes = [1, 64], strides = [1, 1]} : vector<7x512xf32> to vector<1x64xf32>
    %60 = vector.extract_strided_slice %1 {offsets = [1, 0], sizes = [1, 128], strides = [1, 1]} : vector<7x512xf32> to vector<1x128xf32>
    %61 = arith.addf %53, %58 : vector<16x64xf32>
    %62 = vector.broadcast %59 : vector<1x64xf32> to vector<16x64xf32>
    %63 = arith.addf %61, %62 : vector<16x64xf32>
    %cst_26 = arith.constant dense<0xFF800000> : vector<16xf32>
    %64 = vector.multi_reduction <maximumf>, %63, %cst_26 [1] : vector<16x64xf32> to vector<16xf32>
    %65 = vector.shape_cast %64 : vector<16xf32> to vector<16x1xf32>
    %66 = vector.broadcast %65 : vector<16x1xf32> to vector<16x64xf32>
    %67 = arith.subf %63, %66 : vector<16x64xf32>
    %68 = math.exp %67 : vector<16x64xf32>
    %cst_27 = arith.constant dense<0.000000e+00> : vector<16xf32>
    %69 = vector.multi_reduction <add>, %68, %cst_27 [1] : vector<16x64xf32> to vector<16xf32>
    %70 = vector.shape_cast %69 : vector<16xf32> to vector<16x1xf32>
    %71 = tpu.reciprocal %70 {approx = true} : vector<16x1xf32> -> vector<16x1xf32>
    %72 = vector.broadcast %71 : vector<16x1xf32> to vector<16x64xf32>
    %73 = arith.mulf %68, %72 : vector<16x64xf32>
    %74 = arith.addf %53, %57 : vector<16x64xf32>
    %75 = vector.broadcast %59 : vector<1x64xf32> to vector<16x64xf32>
    %76 = arith.addf %74, %75 : vector<16x64xf32>
    %cst_28 = arith.constant dense<0xFF800000> : vector<16xf32>
    %77 = vector.multi_reduction <maximumf>, %76, %cst_28 [1] : vector<16x64xf32> to vector<16xf32>
    %78 = vector.shape_cast %77 : vector<16xf32> to vector<16x1xf32>
    %79 = vector.broadcast %78 : vector<16x1xf32> to vector<16x64xf32>
    %80 = arith.subf %76, %79 : vector<16x64xf32>
    %81 = math.exp %80 : vector<16x64xf32>
    %cst_29 = arith.constant dense<0.000000e+00> : vector<16xf32>
    %82 = vector.multi_reduction <add>, %81, %cst_29 [1] : vector<16x64xf32> to vector<16xf32>
    %83 = vector.shape_cast %82 : vector<16xf32> to vector<16x1xf32>
    %84 = tpu.reciprocal %83 {approx = true} : vector<16x1xf32> -> vector<16x1xf32>
    %85 = vector.broadcast %84 : vector<16x1xf32> to vector<16x64xf32>
    %86 = arith.mulf %81, %85 : vector<16x64xf32>
    %87 = arith.addf %73, %86 : vector<16x64xf32>
    %88 = arith.addf %55, %56 : vector<16x64xf32>
    %89 = vector.broadcast %59 : vector<1x64xf32> to vector<16x64xf32>
    %90 = arith.addf %88, %89 : vector<16x64xf32>
    %cst_30 = arith.constant dense<0xFF800000> : vector<16xf32>
    %91 = vector.multi_reduction <maximumf>, %90, %cst_30 [1] : vector<16x64xf32> to vector<16xf32>
    %92 = vector.shape_cast %91 : vector<16xf32> to vector<16x1xf32>
    %93 = vector.broadcast %92 : vector<16x1xf32> to vector<16x64xf32>
    %94 = arith.subf %90, %93 : vector<16x64xf32>
    %95 = math.exp %94 : vector<16x64xf32>
    %cst_31 = arith.constant dense<0.000000e+00> : vector<16xf32>
    %96 = vector.multi_reduction <add>, %95, %cst_31 [1] : vector<16x64xf32> to vector<16xf32>
    %97 = vector.shape_cast %96 : vector<16xf32> to vector<16x1xf32>
    %98 = tpu.reciprocal %97 {approx = true} : vector<16x1xf32> -> vector<16x1xf32>
    %99 = vector.broadcast %98 : vector<16x1xf32> to vector<16x64xf32>
    %100 = arith.mulf %95, %99 : vector<16x64xf32>
    %101 = arith.addf %55, %57 : vector<16x64xf32>
    %102 = vector.broadcast %59 : vector<1x64xf32> to vector<16x64xf32>
    %103 = arith.addf %101, %102 : vector<16x64xf32>
    %cst_32 = arith.constant dense<0xFF800000> : vector<16xf32>
    %104 = vector.multi_reduction <maximumf>, %103, %cst_32 [1] : vector<16x64xf32> to vector<16xf32>
    %105 = vector.shape_cast %104 : vector<16xf32> to vector<16x1xf32>
    %106 = vector.broadcast %105 : vector<16x1xf32> to vector<16x64xf32>
    %107 = arith.subf %103, %106 : vector<16x64xf32>
    %108 = math.exp %107 : vector<16x64xf32>
    %cst_33 = arith.constant dense<0.000000e+00> : vector<16xf32>
    %109 = vector.multi_reduction <add>, %108, %cst_33 [1] : vector<16x64xf32> to vector<16xf32>
    %110 = vector.shape_cast %109 : vector<16xf32> to vector<16x1xf32>
    %111 = tpu.reciprocal %110 {approx = true} : vector<16x1xf32> -> vector<16x1xf32>
    %112 = vector.broadcast %111 : vector<16x1xf32> to vector<16x64xf32>
    %113 = arith.mulf %108, %112 : vector<16x64xf32>
    %114 = arith.addf %100, %113 : vector<16x64xf32>
    %115 = arith.addf %54, %56 : vector<16x64xf32>
    %116 = vector.broadcast %59 : vector<1x64xf32> to vector<16x64xf32>
    %117 = arith.addf %115, %116 : vector<16x64xf32>
    %cst_34 = arith.constant dense<0xFF800000> : vector<16xf32>
    %118 = vector.multi_reduction <maximumf>, %117, %cst_34 [1] : vector<16x64xf32> to vector<16xf32>
    %119 = vector.shape_cast %118 : vector<16xf32> to vector<16x1xf32>
    %120 = vector.broadcast %119 : vector<16x1xf32> to vector<16x64xf32>
    %121 = arith.subf %117, %120 : vector<16x64xf32>
    %122 = math.exp %121 : vector<16x64xf32>
    %cst_35 = arith.constant dense<0.000000e+00> : vector<16xf32>
    %123 = vector.multi_reduction <add>, %122, %cst_35 [1] : vector<16x64xf32> to vector<16xf32>
    %124 = vector.shape_cast %123 : vector<16xf32> to vector<16x1xf32>
    %125 = tpu.reciprocal %124 {approx = true} : vector<16x1xf32> -> vector<16x1xf32>
    %126 = vector.broadcast %125 : vector<16x1xf32> to vector<16x64xf32>
    %127 = arith.mulf %122, %126 : vector<16x64xf32>
    %128 = arith.addf %54, %58 : vector<16x64xf32>
    %129 = vector.broadcast %59 : vector<1x64xf32> to vector<16x64xf32>
    %130 = arith.addf %128, %129 : vector<16x64xf32>
    %cst_36 = arith.constant dense<0xFF800000> : vector<16xf32>
    %131 = vector.multi_reduction <maximumf>, %130, %cst_36 [1] : vector<16x64xf32> to vector<16xf32>
    %132 = vector.shape_cast %131 : vector<16xf32> to vector<16x1xf32>
    %133 = vector.broadcast %132 : vector<16x1xf32> to vector<16x64xf32>
    %134 = arith.subf %130, %133 : vector<16x64xf32>
    %135 = math.exp %134 : vector<16x64xf32>
    %cst_37 = arith.constant dense<0.000000e+00> : vector<16xf32>
    %136 = vector.multi_reduction <add>, %135, %cst_37 [1] : vector<16x64xf32> to vector<16xf32>
    %137 = vector.shape_cast %136 : vector<16xf32> to vector<16x1xf32>
    %138 = tpu.reciprocal %137 {approx = true} : vector<16x1xf32> -> vector<16x1xf32>
    %139 = vector.broadcast %138 : vector<16x1xf32> to vector<16x64xf32>
    %140 = arith.mulf %135, %139 : vector<16x64xf32>
    %141 = arith.addf %127, %140 : vector<16x64xf32>
    %142 = tpu.concatenate %87, %114, %141 in 0 : vector<16x64xf32>, vector<16x64xf32>, vector<16x64xf32> -> vector<48x64xf32>
    %143 = arith.truncf %142 : vector<48x64xf32> to vector<48x64xbf16>
    %c0_38 = arith.constant 0 : index
    %c0_39 = arith.constant 0 : index
    %144 = vector.load %arg11[%c0_38, %c0_39] : memref<64x128xbf16, #tpu.memory_space<vmem>>, vector<64x128xbf16>
    %cst_40 = arith.constant dense<0.000000e+00> : vector<48x128xf32>
    %145 = tpu.matmul %143, %144, %cst_40 {dimension_numbers = #tpu.dot_dimension_numbers<[1], [0], [0], [1], [0, 0, 1, 1], [], []>} : vector<48x64xbf16>, vector<64x128xbf16>, vector<48x128xf32> -> vector<48x128xf32>
    %146 = vector.broadcast %60 : vector<1x128xf32> to vector<48x128xf32>
    %147 = arith.addf %145, %146 : vector<48x128xf32>
    %cst_41 = arith.constant dense<0xFF800000> : vector<48xf32>
    %148 = vector.multi_reduction <maximumf>, %147, %cst_41 [1] : vector<48x128xf32> to vector<48xf32>
    %149 = vector.shape_cast %148 : vector<48xf32> to vector<48x1xf32>
    %150 = vector.broadcast %149 : vector<48x1xf32> to vector<48x128xf32>
    %151 = arith.subf %147, %150 : vector<48x128xf32>
    %152 = math.exp %151 : vector<48x128xf32>
    %cst_42 = arith.constant dense<0.000000e+00> : vector<48xf32>
    %153 = vector.multi_reduction <add>, %152, %cst_42 [1] : vector<48x128xf32> to vector<48xf32>
    %154 = vector.shape_cast %153 : vector<48xf32> to vector<48x1xf32>
    %155 = tpu.reciprocal %154 {approx = true} : vector<48x1xf32> -> vector<48x1xf32>
    %156 = vector.broadcast %155 : vector<48x1xf32> to vector<48x128xf32>
    %157 = arith.mulf %152, %156 : vector<48x128xf32>
    %158 = vector.extract_strided_slice %157 {offsets = [0, 0], sizes = [16, 128], strides = [1, 1]} : vector<48x128xf32> to vector<16x128xf32>
    %159 = arith.mulf %16, %158 : vector<16x128xf32>
    %160 = vector.extract_strided_slice %157 {offsets = [16, 0], sizes = [16, 128], strides = [1, 1]} : vector<48x128xf32> to vector<16x128xf32>
    %161 = arith.mulf %46, %160 : vector<16x128xf32>
    %162 = vector.extract_strided_slice %157 {offsets = [32, 0], sizes = [16, 128], strides = [1, 1]} : vector<48x128xf32> to vector<16x128xf32>
    %163 = arith.mulf %31, %162 : vector<16x128xf32>
    %164 = tpu.concatenate %159, %161, %163 in 1 : vector<16x128xf32>, vector<16x128xf32>, vector<16x128xf32> -> vector<16x384xf32>
    %165 = arith.truncf %164 : vector<16x384xf32> to vector<16x384xbf16>
    %c0_43 = arith.constant 0 : index
    %c0_44 = arith.constant 0 : index
    %166 = vector.load %arg12[%c0_43, %c0_44] : memref<384x256xbf16, #tpu.memory_space<vmem>>, vector<384x256xbf16>
    %cst_45 = arith.constant dense<0.000000e+00> : vector<16x256xf32>
    %167 = tpu.matmul %165, %166, %cst_45 {dimension_numbers = #tpu.dot_dimension_numbers<[1], [0], [0], [1], [0, 0, 1, 1], [], []>} : vector<16x384xbf16>, vector<384x256xbf16>, vector<16x256xf32> -> vector<16x256xf32>
    %c0_46 = arith.constant 0 : index
    %c0_47 = arith.constant 0 : index
    %168 = vector.load %arg4[%c0_46, %c0_47] : memref<16x8xf32, #tpu.memory_space<vmem>>, vector<16x8xf32>
    %169 = arith.truncf %168 : vector<16x8xf32> to vector<16x8xbf16>
    %c0_48 = arith.constant 0 : index
    %c0_49 = arith.constant 0 : index
    %170 = vector.load %arg13[%c0_48, %c0_49] : memref<8x256xbf16, #tpu.memory_space<vmem>>, vector<8x256xbf16>
    %cst_50 = arith.constant dense<0.000000e+00> : vector<16x256xf32>
    %171 = tpu.matmul %169, %170, %cst_50 {dimension_numbers = #tpu.dot_dimension_numbers<[1], [0], [0], [1], [0, 0, 1, 1], [], []>} : vector<16x8xbf16>, vector<8x256xbf16>, vector<16x256xf32> -> vector<16x256xf32>
    %172 = arith.addf %167, %171 : vector<16x256xf32>
    %173 = vector.extract_strided_slice %1 {offsets = [2, 0], sizes = [1, 256], strides = [1, 1]} : vector<7x512xf32> to vector<1x256xf32>
    %174 = vector.broadcast %173 : vector<1x256xf32> to vector<16x256xf32>
    %175 = arith.addf %172, %174 : vector<16x256xf32>
    %cst_51 = arith.constant 0.000000e+00 : f32
    %176 = vector.broadcast %cst_51 : f32 to vector<16x256xf32>
    %177 = arith.maximumf %175, %176 : vector<16x256xf32>
    %178 = arith.truncf %177 : vector<16x256xf32> to vector<16x256xbf16>
    %c0_52 = arith.constant 0 : index
    %c0_53 = arith.constant 0 : index
    %179 = vector.load %arg14[%c0_52, %c0_53] : memref<256x128xbf16, #tpu.memory_space<vmem>>, vector<256x128xbf16>
    %cst_54 = arith.constant dense<0.000000e+00> : vector<16x128xf32>
    %180 = tpu.matmul %178, %179, %cst_54 {dimension_numbers = #tpu.dot_dimension_numbers<[1], [0], [0], [1], [0, 0, 1, 1], [], []>} : vector<16x256xbf16>, vector<256x128xbf16>, vector<16x128xf32> -> vector<16x128xf32>
    %181 = vector.extract_strided_slice %1 {offsets = [3, 0], sizes = [1, 128], strides = [1, 1]} : vector<7x512xf32> to vector<1x128xf32>
    %182 = vector.broadcast %181 : vector<1x128xf32> to vector<16x128xf32>
    %183 = arith.addf %180, %182 : vector<16x128xf32>
    %cst_55 = arith.constant 0.000000e+00 : f32
    %184 = vector.broadcast %cst_55 : f32 to vector<16x128xf32>
    %185 = arith.maximumf %183, %184 : vector<16x128xf32>
    %186 = arith.truncf %185 : vector<16x128xf32> to vector<16x128xbf16>
    %c0_56 = arith.constant 0 : index
    %c0_57 = arith.constant 0 : index
    %187 = vector.load %arg15[%c0_56, %c0_57] : memref<128x512xbf16, #tpu.memory_space<vmem>>, vector<128x512xbf16>
    %cst_58 = arith.constant dense<0.000000e+00> : vector<16x512xf32>
    %188 = tpu.matmul %186, %187, %cst_58 {dimension_numbers = #tpu.dot_dimension_numbers<[1], [0], [0], [1], [0, 0, 1, 1], [], []>} : vector<16x128xbf16>, vector<128x512xbf16>, vector<16x512xf32> -> vector<16x512xf32>
    %189 = vector.extract_strided_slice %1 {offsets = [4, 0], sizes = [1, 512], strides = [1, 1]} : vector<7x512xf32> to vector<1x512xf32>
    %190 = vector.broadcast %189 : vector<1x512xf32> to vector<16x512xf32>
    %191 = arith.addf %188, %190 : vector<16x512xf32>
    %cst_59 = arith.constant 0.000000e+00 : f32
    %192 = vector.broadcast %cst_59 : f32 to vector<16x512xf32>
    %193 = arith.maximumf %191, %192 : vector<16x512xf32>
    %194 = arith.truncf %193 : vector<16x512xf32> to vector<16x512xbf16>
    %c0_60 = arith.constant 0 : index
    %c0_61 = arith.constant 0 : index
    %195 = vector.load %arg16[%c0_60, %c0_61] : memref<512x128xbf16, #tpu.memory_space<vmem>>, vector<512x128xbf16>
    %cst_62 = arith.constant dense<0.000000e+00> : vector<16x128xf32>
    %196 = tpu.matmul %194, %195, %cst_62 {dimension_numbers = #tpu.dot_dimension_numbers<[1], [0], [0], [1], [0, 0, 1, 1], [], []>} : vector<16x512xbf16>, vector<512x128xbf16>, vector<16x128xf32> -> vector<16x128xf32>
    %197 = vector.extract_strided_slice %1 {offsets = [5, 0], sizes = [1, 128], strides = [1, 1]} : vector<7x512xf32> to vector<1x128xf32>
    %198 = vector.broadcast %197 : vector<1x128xf32> to vector<16x128xf32>
    %199 = arith.addf %196, %198 : vector<16x128xf32>
    %cst_63 = arith.constant 0.000000e+00 : f32
    %200 = vector.broadcast %cst_63 : f32 to vector<16x128xf32>
    %201 = arith.maximumf %199, %200 : vector<16x128xf32>
    %202 = arith.truncf %201 : vector<16x128xf32> to vector<16x128xbf16>
    %c0_64 = arith.constant 0 : index
    %c0_65 = arith.constant 0 : index
    %203 = vector.load %arg17[%c0_64, %c0_65] : memref<128x128xbf16, #tpu.memory_space<vmem>>, vector<128x128xbf16>
    %cst_66 = arith.constant dense<0.000000e+00> : vector<16x128xf32>
    %204 = tpu.matmul %202, %203, %cst_66 {dimension_numbers = #tpu.dot_dimension_numbers<[1], [0], [0], [1], [0, 0, 1, 1], [], []>} : vector<16x128xbf16>, vector<128x128xbf16>, vector<16x128xf32> -> vector<16x128xf32>
    %205 = vector.extract_strided_slice %1 {offsets = [6, 0], sizes = [1, 128], strides = [1, 1]} : vector<7x512xf32> to vector<1x128xf32>
    %206 = vector.broadcast %205 : vector<1x128xf32> to vector<16x128xf32>
    %207 = arith.addf %204, %206 : vector<16x128xf32>
    %c0_67 = arith.constant 0 : index
    %c0_68 = arith.constant 0 : index
    %208 = vector.load %arg19[%c0_67, %c0_68] : memref<16x128xf32, #tpu.memory_space<vmem>>, vector<16x128xf32>
    tpu.vector_store %arg19[%c0_67, %c0_68], %207 {strides = array<i32>} : memref<16x128xf32, #tpu.memory_space<vmem>>, vector<16x128xf32>,
    return
  }
  func.func @transform_0(%arg0: i32) -> (i32, i32) {
    %c0_i32 = arith.constant 0 : i32
    %c0_i32_0 = arith.constant 0 : i32
    return %arg0, %c0_i32 : i32, i32
  }
  func.func @transform_1(%arg0: i32) -> (i32, i32) {
    %c0_i32 = arith.constant 0 : i32
    %c0_i32_0 = arith.constant 0 : i32
    return %arg0, %c0_i32 : i32, i32
  }
  func.func @transform_2(%arg0: i32) -> (i32, i32) {
    %c0_i32 = arith.constant 0 : i32
    %c0_i32_0 = arith.constant 0 : i32
    return %arg0, %c0_i32 : i32, i32
  }
  func.func @transform_3(%arg0: i32) -> (i32, i32) {
    %c0_i32 = arith.constant 0 : i32
    %c0_i32_0 = arith.constant 0 : i32
    return %arg0, %c0_i32 : i32, i32
  }
  func.func @transform_4(%arg0: i32) -> (i32, i32) {
    %c0_i32 = arith.constant 0 : i32
    %c0_i32_0 = arith.constant 0 : i32
    %c0_i32_1 = arith.constant 0 : i32
    return %c0_i32, %c0_i32_0 : i32, i32
  }
  func.func @transform_5(%arg0: i32) -> (i32, i32) {
    %c0_i32 = arith.constant 0 : i32
    %c0_i32_0 = arith.constant 0 : i32
    %c0_i32_1 = arith.constant 0 : i32
    return %c0_i32, %c0_i32_0 : i32, i32
  }
  func.func @transform_6(%arg0: i32) -> (i32, i32) {
    %c0_i32 = arith.constant 0 : i32
    %c0_i32_0 = arith.constant 0 : i32
    %c0_i32_1 = arith.constant 0 : i32
    return %c0_i32, %c0_i32_0 : i32, i32
  }
  func.func @transform_7(%arg0: i32) -> (i32, i32) {
    %c0_i32 = arith.constant 0 : i32
    %c0_i32_0 = arith.constant 0 : i32
    %c0_i32_1 = arith.constant 0 : i32
    return %c0_i32, %c0_i32_0 : i32, i32
  }
  func.func @transform_8(%arg0: i32) -> (i32, i32) {
    %c0_i32 = arith.constant 0 : i32
    %c0_i32_0 = arith.constant 0 : i32
    %c0_i32_1 = arith.constant 0 : i32
    return %c0_i32, %c0_i32_0 : i32, i32
  }
  func.func @transform_9(%arg0: i32) -> (i32, i32) {
    %c0_i32 = arith.constant 0 : i32
    %c0_i32_0 = arith.constant 0 : i32
    %c0_i32_1 = arith.constant 0 : i32
    return %c0_i32, %c0_i32_0 : i32, i32
  }
  func.func @transform_10(%arg0: i32) -> (i32, i32) {
    %c0_i32 = arith.constant 0 : i32
    %c0_i32_0 = arith.constant 0 : i32
    %c0_i32_1 = arith.constant 0 : i32
    return %c0_i32, %c0_i32_0 : i32, i32
  }
  func.func @transform_11(%arg0: i32) -> (i32, i32) {
    %c0_i32 = arith.constant 0 : i32
    %c0_i32_0 = arith.constant 0 : i32
    %c0_i32_1 = arith.constant 0 : i32
    return %c0_i32, %c0_i32_0 : i32, i32
  }
  func.func @transform_12(%arg0: i32) -> (i32, i32) {
    %c0_i32 = arith.constant 0 : i32
    %c0_i32_0 = arith.constant 0 : i32
    %c0_i32_1 = arith.constant 0 : i32
    return %c0_i32, %c0_i32_0 : i32, i32
  }
  func.func @transform_13(%arg0: i32) -> (i32, i32) {
    %c0_i32 = arith.constant 0 : i32
    %c0_i32_0 = arith.constant 0 : i32
    %c0_i32_1 = arith.constant 0 : i32
    return %c0_i32, %c0_i32_0 : i32, i32
  }
  func.func @transform_14(%arg0: i32) -> (i32, i32) {
    %c0_i32 = arith.constant 0 : i32
    %c0_i32_0 = arith.constant 0 : i32
    %c0_i32_1 = arith.constant 0 : i32
    return %c0_i32, %c0_i32_0 : i32, i32
  }
  func.func @transform_15(%arg0: i32) -> (i32, i32) {
    %c0_i32 = arith.constant 0 : i32
    %c0_i32_0 = arith.constant 0 : i32
    %c0_i32_1 = arith.constant 0 : i32
    return %c0_i32, %c0_i32_0 : i32, i32
  }
  func.func @transform_16(%arg0: i32) -> (i32, i32) {
    %c0_i32 = arith.constant 0 : i32
    %c0_i32_0 = arith.constant 0 : i32
    %c0_i32_1 = arith.constant 0 : i32
    return %c0_i32, %c0_i32_0 : i32, i32
  }
  func.func @transform_17(%arg0: i32) -> (i32, i32) {
    %c0_i32 = arith.constant 0 : i32
    %c0_i32_0 = arith.constant 0 : i32
    %c0_i32_1 = arith.constant 0 : i32
    return %c0_i32, %c0_i32_0 : i32, i32
  }
  func.func @transform_18(%arg0: i32) -> (i32, i32) {
    %c0_i32 = arith.constant 0 : i32
    %c0_i32_0 = arith.constant 0 : i32
    return %arg0, %c0_i32 : i32, i32
  }
}

</mosaic_0001>

<llo_original>
// kernel: tpu_custom_call.1
$region0: #{tpu_custom_call.1}
  #allocation0 [shape = 'u32[]', space=smem, size = 0x4, offset = 0x4, fixed_abs, tag = 'smem constant byte address 0x4 - core index']
  #allocation1 [shape = 'u32[72,128]{1,0:T(1,128)}', space=vmem, size = 0x9000, scoped, tag = 'internal scratch']
  %s0 = inlined_call_operand.hbm [shape: f32[16,256], index: 0, kind: input, shape index: {}]
  %s1 = inlined_call_operand.hbm [shape: f32[16,128], index: 1, kind: input, shape index: {}]
  %s2 = inlined_call_operand.hbm [shape: f32[16,64], index: 2, kind: input, shape index: {}]
  %s3 = inlined_call_operand.vmem [shape: f32[16,8], index: 3, kind: input, shape index: {}]
  %s4 = inlined_call_operand.vmem [shape: bf16[256,128], index: 4, kind: input, shape index: {}]
  %s5 = inlined_call_operand.hbm [shape: bf16[128,128], index: 5, kind: input, shape index: {}]
  %s6 = inlined_call_operand.hbm [shape: bf16[64,128], index: 6, kind: input, shape index: {}]
  %s7 = inlined_call_operand.hbm [shape: f32[9,128], index: 7, kind: input, shape index: {}]
  %s8 = inlined_call_operand.vmem [shape: bf16[128,64], index: 8, kind: input, shape index: {}]
  %s9 = inlined_call_operand.vmem [shape: bf16[128,64], index: 9, kind: input, shape index: {}]
  %s10 = inlined_call_operand.hbm [shape: bf16[64,128], index: 10, kind: input, shape index: {}]
  %s11 = inlined_call_operand.hbm [shape: bf16[384,256], index: 11, kind: input, shape index: {}]
  %s12 = inlined_call_operand.hbm [shape: bf16[8,256], index: 12, kind: input, shape index: {}]
  %s13 = inlined_call_operand.hbm [shape: bf16[256,128], index: 13, kind: input, shape index: {}]
  %s14 = inlined_call_operand.hbm [shape: bf16[128,512], index: 14, kind: input, shape index: {}]
  %s15 = inlined_call_operand.hbm [shape: bf16[512,128], index: 15, kind: input, shape index: {}]
  %s16 = inlined_call_operand.vmem [shape: bf16[128,128], index: 16, kind: input, shape index: {}]
  %s17 = inlined_call_operand.hbm [shape: f32[7,512], index: 17, kind: input, shape index: {}]
  %s18 = inlined_call_operand.hbm [shape: f32[16,128], index: 18, kind: output, shape index: {}]
  %s19 = sld [smem:[#allocation0]]
  $region134: #{tpu_custom_call.1} parent=0
    _
  %s21 = ssub.s32 1, %s19
  %s22 = scalar_select 0, %s21, %s19
  $region1: #{tpu_custom_call.1} parent=0
    #allocation2 [shape = 'u8[16384]{0}', space=vmem, size = 0x4000, scoped, tag = 'input window, operand 0, single buffered']
    #allocation3 [shape = 's32[1]{0}', space=sflag, size = 0x4, scoped, tag = 'scoped memory for tpu_custom_call.1']
    #allocation4 [shape = 's32[1]{0}', space=sflag, size = 0x4, scoped, tag = 'scoped memory for tpu_custom_call.1']
    #allocation5 [shape = 'u8[8192]{0}', space=vmem, size = 0x2000, scoped, tag = 'input window, operand 1, single buffered']
    #allocation6 [shape = 's32[1]{0}', space=sflag, size = 0x4, scoped, tag = 'scoped memory for tpu_custom_call.1']
    #allocation7 [shape = 'u8[8192]{0}', space=vmem, size = 0x2000, scoped, tag = 'input window, operand 2, single buffered']
    #allocation8 [shape = 'u8[32768]{0}', space=vmem, size = 0x8000, scoped, tag = 'input window, operand 5, single buffered']
    #allocation9 [shape = 's32[1]{0}', space=sflag, size = 0x4, scoped, tag = 'scoped memory for tpu_custom_call.1']
    #allocation10 [shape = 'u8[16384]{0}', space=vmem, size = 0x4000, scoped, tag = 'input window, operand 6, single buffered']
    #allocation11 [shape = 'u8[8192]{0}', space=vmem, size = 0x2000, scoped, tag = 'input window, operand 7, single buffered']
    #allocation12 [shape = 's32[1]{0}', space=sflag, size = 0x4, scoped, tag = 'scoped memory for tpu_custom_call.1']
    #allocation13 [shape = 'u8[16384]{0}', space=vmem, size = 0x4000, scoped, tag = 'input window, operand 10, single buffered']
    #allocation14 [shape = 'u8[196608]{0}', space=vmem, size = 0x30000, scoped, tag = 'input window, operand 11, single buffered']
    #allocation15 [shape = 's32[1]{0}', space=sflag, size = 0x4, scoped, tag = 'scoped memory for tpu_custom_call.1']
    #allocation16 [shape = 'u8[4096]{0}', space=vmem, size = 0x1000, scoped, tag = 'input window, operand 12, single buffered']
    #allocation17 [shape = 'u8[65536]{0}', space=vmem, size = 0x10000, scoped, tag = 'input window, operand 13, single buffered']
    #allocation18 [shape = 's32[1]{0}', space=sflag, size = 0x4, scoped, tag = 'scoped memory for tpu_custom_call.1']
    #allocation19 [shape = 'u8[131072]{0}', space=vmem, size = 0x20000, scoped, tag = 'input window, operand 14, single buffered']
    #allocation20 [shape = 'u8[131072]{0}', space=vmem, size = 0x20000, scoped, tag = 'input window, operand 15, single buffered']
    #allocation21 [shape = 's32[1]{0}', space=sflag, size = 0x4, scoped, tag = 'scoped memory for tpu_custom_call.1']
    #allocation22 [shape = 'u8[16384]{0}', space=vmem, size = 0x4000, scoped, tag = 'input window, operand 17, single buffered']
    #allocation23 [shape = 'u8[8192]{0}', space=vmem, size = 0x2000, scoped, tag = 'output window, operand 0, single buffered']
    %23 = vsyncpa [#allocation3], 0
    %24 = vsyncpa [#allocation6], 0
    %25 = vsyncpa [#allocation9], 0
    %26 = vsyncpa [#allocation12], 0
    %27 = vsyncpa [#allocation15], 0
    %28 = vsyncpa [#allocation18], 0
    %29 = vsyncpa [#allocation21], 0
    %30 = vsyncpa [#allocation4], 0
    // Predicated region
    $region2: #{tpu_custom_call.1} parent=1 // pred_check
      _
    $region3: #{tpu_custom_call.1} parent=1 // pred_check_branch
      %32 = sbr.rel (0) target = $region5
    $region4: #{tpu_custom_call.1} parent=1 // pred_region
      %34 = vsyncadd [#allocation3], 0
      %s35 = sshll.u32 %s0, 4
      %s36 = int_to_ptr.hbm [resolvable:$true] %s35
      %s37 = sshll.u32 [#allocation2], 4
      %s38 = int_to_ptr.vmem [resolvable:$true] %s37
      %43 = dma.hbm_to_vmem [thread:$0]  %s36, 512, %s38, [#allocation3], 256, 256, 16
    $region5: #{tpu_custom_call.1} parent=1 // pred_fallthru
      _
    // Predicated region
    $region6: #{tpu_custom_call.1} parent=1 // pred_check
      _
    $region7: #{tpu_custom_call.1} parent=1 // pred_check_branch
      %45 = sbr.rel (0) target = $region9
    $region8: #{tpu_custom_call.1} parent=1 // pred_region
      %47 = vsyncadd [#allocation6], 0
      %s48 = sshll.u32 %s1, 4
      %s49 = int_to_ptr.hbm [resolvable:$true] %s48
      %s50 = sshll.u32 [#allocation5], 4
      %s51 = int_to_ptr.vmem [resolvable:$true] %s50
      %56 = dma.hbm_to_vmem [thread:$0]  %s49, 256, %s51, [#allocation6], 128, 128, 8
    $region9: #{tpu_custom_call.1} parent=1 // pred_fallthru
      _
    // Predicated region
    $region10: #{tpu_custom_call.1} parent=1 // pred_check
      _
    $region11: #{tpu_custom_call.1} parent=1 // pred_check_branch
      %58 = sbr.rel (0) target = $region13
    $region12: #{tpu_custom_call.1} parent=1 // pred_region
      %60 = vsyncadd [#allocation6], 0
      %s61 = sshll.u32 %s2, 4
      %s62 = int_to_ptr.hbm [resolvable:$true] %s61
      %s63 = sshll.u32 [#allocation7], 4
      %s64 = int_to_ptr.vmem [resolvable:$true] %s63
      %69 = dma.hbm_to_vmem [thread:$0]  %s62, 256, %s64, [#allocation6], 128, 128, 8
    $region13: #{tpu_custom_call.1} parent=1 // pred_fallthru
      _
    // Predicated region
    $region14: #{tpu_custom_call.1} parent=1 // pred_check
      _
    $region15: #{tpu_custom_call.1} parent=1 // pred_check_branch
      %71 = sbr.rel (0) target = $region17
    $region16: #{tpu_custom_call.1} parent=1 // pred_region
      _
    $region17: #{tpu_custom_call.1} parent=1 // pred_fallthru
      _
    // Predicated region
    $region18: #{tpu_custom_call.1} parent=1 // pred_check
      _
    $region19: #{tpu_custom_call.1} parent=1 // pred_check_branch
      %73 = sbr.rel (0) target = $region21
    $region20: #{tpu_custom_call.1} parent=1 // pred_region
      _
    $region21: #{tpu_custom_call.1} parent=1 // pred_fallthru
      _
    // Predicated region
    $region22: #{tpu_custom_call.1} parent=1 // pred_check
      _
    $region23: #{tpu_custom_call.1} parent=1 // pred_check_branch
      %75 = sbr.rel (0) target = $region25
    $region24: #{tpu_custom_call.1} parent=1 // pred_region
      %77 = vsyncadd [#allocation9], 0
      %s78 = sshll.u32 %s5, 4
      %s79 = int_to_ptr.hbm [resolvable:$true] %s78
      %s80 = sshll.u32 [#allocation8], 4
      %s81 = int_to_ptr.vmem [resolvable:$true] %s80
      %86 = dma.hbm_to_vmem [thread:$0]  %s79, 1024, %s81, [#allocation9], 64, 64, 4
    $region25: #{tpu_custom_call.1} parent=1 // pred_fallthru
      _
    // Predicated region
    $region26: #{tpu_custom_call.1} parent=1 // pred_check
      _
    $region27: #{tpu_custom_call.1} parent=1 // pred_check_branch
      %88 = sbr.rel (0) target = $region29
    $region28: #{tpu_custom_call.1} parent=1 // pred_region
      %90 = vsyncadd [#allocation9], 0
      %s91 = sshll.u32 %s6, 4
      %s92 = int_to_ptr.hbm [resolvable:$true] %s91
      %s93 = sshll.u32 [#allocation10], 4
      %s94 = int_to_ptr.vmem [resolvable:$true] %s93
      %99 = dma.hbm_to_vmem [thread:$0]  %s92, 512, %s94, [#allocation9], 64, 64, 4
    $region29: #{tpu_custom_call.1} parent=1 // pred_fallthru
      _
    // Predicated region
    $region30: #{tpu_custom_call.1} parent=1 // pred_check
      _
    $region31: #{tpu_custom_call.1} parent=1 // pred_check_branch
      %101 = sbr.rel (0) target = $region33
    $region32: #{tpu_custom_call.1} parent=1 // pred_region
      %103 = vsyncadd [#allocation12], 0
      %s104 = sshll.u32 %s7, 4
      %s105 = int_to_ptr.hbm [resolvable:$true] %s104
      %s106 = sshll.u32 [#allocation11], 4
      %s107 = int_to_ptr.vmem [resolvable:$true] %s106
      %112 = dma.hbm_to_vmem [thread:$0]  %s105, 256, %s107, [#allocation12], 128, 128, 8
    $region33: #{tpu_custom_call.1} parent=1 // pred_fallthru
      _
    // Predicated region
    $region34: #{tpu_custom_call.1} parent=1 // pred_check
      _
    $region35: #{tpu_custom_call.1} parent=1 // pred_check_branch
      %114 = sbr.rel (0) target = $region37
    $region36: #{tpu_custom_call.1} parent=1 // pred_region
      _
    $region37: #{tpu_custom_call.1} parent=1 // pred_fallthru
      _
    // Predicated region
    $region38: #{tpu_custom_call.1} parent=1 // pred_check
      _
    $region39: #{tpu_custom_call.1} parent=1 // pred_check_branch
      %116 = sbr.rel (0) target = $region41
    $region40: #{tpu_custom_call.1} parent=1 // pred_region
      _
    $region41: #{tpu_custom_call.1} parent=1 // pred_fallthru
      _
    // Predicated region
    $region42: #{tpu_custom_call.1} parent=1 // pred_check
      _
    $region43: #{tpu_custom_call.1} parent=1 // pred_check_branch
      %118 = sbr.rel (0) target = $region45
    $region44: #{tpu_custom_call.1} parent=1 // pred_region
      %120 = vsyncadd [#allocation12], 0
      %s121 = sshll.u32 %s10, 4
      %s122 = int_to_ptr.hbm [resolvable:$true] %s121
      %s123 = sshll.u32 [#allocation13], 4
      %s124 = int_to_ptr.vmem [resolvable:$true] %s123
      %129 = dma.hbm_to_vmem [thread:$0]  %s122, 512, %s124, [#allocation12], 64, 64, 4
    $region45: #{tpu_custom_call.1} parent=1 // pred_fallthru
      _
    // Predicated region
    $region46: #{tpu_custom_call.1} parent=1 // pred_check
      _
    $region47: #{tpu_custom_call.1} parent=1 // pred_check_branch
      %131 = sbr.rel (0) target = $region49
    $region48: #{tpu_custom_call.1} parent=1 // pred_region
      %133 = vsyncadd [#allocation15], 0
      %s134 = sshll.u32 %s11, 4
      %s135 = int_to_ptr.hbm [resolvable:$true] %s134
      %s136 = sshll.u32 [#allocation14], 4
      %s137 = int_to_ptr.vmem [resolvable:$true] %s136
      %142 = dma.hbm_to_vmem [thread:$0]  %s135, 6144, %s137, [#allocation15], 128, 128, 8
    $region49: #{tpu_custom_call.1} parent=1 // pred_fallthru
      _
    // Predicated region
    $region50: #{tpu_custom_call.1} parent=1 // pred_check
      _
    $region51: #{tpu_custom_call.1} parent=1 // pred_check_branch
      %144 = sbr.rel (0) target = $region53
    $region52: #{tpu_custom_call.1} parent=1 // pred_region
      %146 = vsyncadd [#allocation15], 0
      %s148 = sshll.u32 %s12, 4
      %s149 = int_to_ptr.hbm [resolvable:$true] %s148
      %s150 = sshll.u32 [#allocation16], 4
      %s151 = int_to_ptr.vmem [resolvable:$true] %s150
      %153 = dma.hbm_to_vmem [thread:$0]  %s149, 128, %s151, [#allocation15]
    $region53: #{tpu_custom_call.1} parent=1 // pred_fallthru
      _
    // Predicated region
    $region54: #{tpu_custom_call.1} parent=1 // pred_check
      _
    $region55: #{tpu_custom_call.1} parent=1 // pred_check_branch
      %155 = sbr.rel (0) target = $region57
    $region56: #{tpu_custom_call.1} parent=1 // pred_region
      %157 = vsyncadd [#allocation18], 0
      %s158 = sshll.u32 %s13, 4
      %s159 = int_to_ptr.hbm [resolvable:$true] %s158
      %s160 = sshll.u32 [#allocation17], 4
      %s161 = int_to_ptr.vmem [resolvable:$true] %s160
      %166 = dma.hbm_to_vmem [thread:$0]  %s159, 2048, %s161, [#allocation18], 64, 64, 4
    $region57: #{tpu_custom_call.1} parent=1 // pred_fallthru
      _
    // Predicated region
    $region58: #{tpu_custom_call.1} parent=1 // pred_check
      _
    $region59: #{tpu_custom_call.1} parent=1 // pred_check_branch
      %168 = sbr.rel (0) target = $region61
    $region60: #{tpu_custom_call.1} parent=1 // pred_region
      %170 = vsyncadd [#allocation18], 0
      %s171 = sshll.u32 %s14, 4
      %s172 = int_to_ptr.hbm [resolvable:$true] %s171
      %s173 = sshll.u32 [#allocation19], 4
      %s174 = int_to_ptr.vmem [resolvable:$true] %s173
      %179 = dma.hbm_to_vmem [thread:$0]  %s172, 4096, %s174, [#allocation18], 256, 256, 16
    $region61: #{tpu_custom_call.1} parent=1 // pred_fallthru
      _
    // Predicated region
    $region62: #{tpu_custom_call.1} parent=1 // pred_check
      _
    $region63: #{tpu_custom_call.1} parent=1 // pred_check_branch
      %181 = sbr.rel (0) target = $region65
    $region64: #{tpu_custom_call.1} parent=1 // pred_region
      %183 = vsyncadd [#allocation21], 0
      %s184 = sshll.u32 %s15, 4
      %s185 = int_to_ptr.hbm [resolvable:$true] %s184
      %s186 = sshll.u32 [#allocation20], 4
      %s187 = int_to_ptr.vmem [resolvable:$true] %s186
      %192 = dma.hbm_to_vmem [thread:$0]  %s185, 4096, %s187, [#allocation21], 64, 64, 4
    $region65: #{tpu_custom_call.1} parent=1 // pred_fallthru
      _
    // Predicated region
    $region66: #{tpu_custom_call.1} parent=1 // pred_check
      _
    $region67: #{tpu_custom_call.1} parent=1 // pred_check_branch
      %194 = sbr.rel (0) target = $region69
    $region68: #{tpu_custom_call.1} parent=1 // pred_region
      _
    $region69: #{tpu_custom_call.1} parent=1 // pred_fallthru
      _
    // Predicated region
    $region70: #{tpu_custom_call.1} parent=1 // pred_check
      _
    $region71: #{tpu_custom_call.1} parent=1 // pred_check_branch
      %196 = sbr.rel (0) target = $region73
    $region72: #{tpu_custom_call.1} parent=1 // pred_region
      %198 = vsyncadd [#allocation21], 0
      %s200 = sshll.u32 %s17, 4
      %s201 = int_to_ptr.hbm [resolvable:$true] %s200
      %s202 = sshll.u32 [#allocation22], 4
      %s203 = int_to_ptr.vmem [resolvable:$true] %s202
      %205 = dma.hbm_to_vmem [thread:$0]  %s201, 512, %s203, [#allocation21]
    $region73: #{tpu_custom_call.1} parent=1 // pred_fallthru
      _
    // Predicated region
    $region74: #{tpu_custom_call.1} parent=1 // pred_check
      _
    $region75: #{tpu_custom_call.1} parent=1 // pred_check_branch
      %207 = sbr.rel (0) target = $region77
    $region76: #{tpu_custom_call.1} parent=1 // pred_region
      %209 = dma.done [#allocation3], 512
    $region77: #{tpu_custom_call.1} parent=1 // pred_fallthru
      _
    // Predicated region
    $region78: #{tpu_custom_call.1} parent=1 // pred_check
      _
    $region79: #{tpu_custom_call.1} parent=1 // pred_check_branch
      %211 = sbr.rel (0) target = $region81
    $region80: #{tpu_custom_call.1} parent=1 // pred_region
      %213 = dma.done [#allocation6], 256
    $region81: #{tpu_custom_call.1} parent=1 // pred_fallthru
      _
    // Predicated region
    $region82: #{tpu_custom_call.1} parent=1 // pred_check
      _
    $region83: #{tpu_custom_call.1} parent=1 // pred_check_branch
      %215 = sbr.rel (0) target = $region85
    $region84: #{tpu_custom_call.1} parent=1 // pred_region
      %217 = dma.done [#allocation6], 256
    $region85: #{tpu_custom_call.1} parent=1 // pred_fallthru
      _
    // Predicated region
    $region86: #{tpu_custom_call.1} parent=1 // pred_check
      _
    $region87: #{tpu_custom_call.1} parent=1 // pred_check_branch
      %219 = sbr.rel (0) target = $region89
    $region88: #{tpu_custom_call.1} parent=1 // pred_region
      %221 = dma.done [#allocation9], 1024
    $region89: #{tpu_custom_call.1} parent=1 // pred_fallthru
      _
    // Predicated region
    $region90: #{tpu_custom_call.1} parent=1 // pred_check
      _
    $region91: #{tpu_custom_call.1} parent=1 // pred_check_branch
      %223 = sbr.rel (0) target = $region93
    $region92: #{tpu_custom_call.1} parent=1 // pred_region
      %225 = dma.done [#allocation9], 512
    $region93: #{tpu_custom_call.1} parent=1 // pred_fallthru
      _
    // Predicated region
    $region94: #{tpu_custom_call.1} parent=1 // pred_check
      _
    $region95: #{tpu_custom_call.1} parent=1 // pred_check_branch
      %227 = sbr.rel (0) target = $region97
    $region96: #{tpu_custom_call.1} parent=1 // pred_region
      %229 = dma.done [#allocation12], 256
    $region97: #{tpu_custom_call.1} parent=1 // pred_fallthru
      _
    // Predicated region
    $region98: #{tpu_custom_call.1} parent=1 // pred_check
      _
    $region99: #{tpu_custom_call.1} parent=1 // pred_check_branch
      %231 = sbr.rel (0) target = $region101
    $region100: #{tpu_custom_call.1} parent=1 // pred_region
      %233 = dma.done [#allocation12], 512
    $region101: #{tpu_custom_call.1} parent=1 // pred_fallthru
      _
    // Predicated region
    $region102: #{tpu_custom_call.1} parent=1 // pred_check
      _
    $region103: #{tpu_custom_call.1} parent=1 // pred_check_branch
      %235 = sbr.rel (0) target = $region105
    $region104: #{tpu_custom_call.1} parent=1 // pred_region
      %237 = dma.done [#allocation15], 6144
    $region105: #{tpu_custom_call.1} parent=1 // pred_fallthru
      _
    // Predicated region
    $region106: #{tpu_custom_call.1} parent=1 // pred_check
      _
    $region107: #{tpu_custom_call.1} parent=1 // pred_check_branch
      %239 = sbr.rel (0) target = $region109
    $region108: #{tpu_custom_call.1} parent=1 // pred_region
      %241 = dma.done [#allocation15], 128
    $region109: #{tpu_custom_call.1} parent=1 // pred_fallthru
      _
    // Predicated region
    $region110: #{tpu_custom_call.1} parent=1 // pred_check
      _
    $region111: #{tpu_custom_call.1} parent=1 // pred_check_branch
      %243 = sbr.rel (0) target = $region113
    $region112: #{tpu_custom_call.1} parent=1 // pred_region
      %245 = dma.done [#allocation18], 2048
    $region113: #{tpu_custom_call.1} parent=1 // pred_fallthru
      _
    // Predicated region
    $region114: #{tpu_custom_call.1} parent=1 // pred_check
      _
    $region115: #{tpu_custom_call.1} parent=1 // pred_check_branch
      %247 = sbr.rel (0) target = $region117
    $region116: #{tpu_custom_call.1} parent=1 // pred_region
      %249 = dma.done [#allocation18], 4096
    $region117: #{tpu_custom_call.1} parent=1 // pred_fallthru
      _
    // Predicated region
    $region118: #{tpu_custom_call.1} parent=1 // pred_check
      _
    $region119: #{tpu_custom_call.1} parent=1 // pred_check_branch
      %251 = sbr.rel (0) target = $region121
    $region120: #{tpu_custom_call.1} parent=1 // pred_region
      %253 = dma.done [#allocation21], 4096
    $region121: #{tpu_custom_call.1} parent=1 // pred_fallthru
      _
    // Predicated region
    $region122: #{tpu_custom_call.1} parent=1 // pred_check
      _
    $region123: #{tpu_custom_call.1} parent=1 // pred_check_branch
      %255 = sbr.rel (0) target = $region125
    $region124: #{tpu_custom_call.1} parent=1 // pred_region
      %257 = dma.done [#allocation21], 512
    $region125: #{tpu_custom_call.1} parent=1 // pred_fallthru
      _
    %v259 = vld [vmem:[#allocation11] sm:$0xff]
    %v260 = vld [vmem:[#allocation11 + $0x8] sm:$0x1]
    %v261 = vld [vmem:[#allocation22] sm:$0x7f]
    %v262 = vld [vmem:[#allocation22 + $0x8] sm:$0x7f]
    %v263 = vld [vmem:[#allocation22 + $0x10] sm:$0x7f]
    %v264 = vld [vmem:[#allocation22 + $0x18] sm:$0x7f]
    %v265 = vld [vmem:[#allocation2] sm:$0xff]
    %v266 = vld [vmem:[#allocation2 + $0x8] sm:$0xff]
    %v267 = vld [vmem:[#allocation2 + $0x10] sm:$0xff]
    %v268 = vld [vmem:[#allocation2 + $0x18] sm:$0xff]
    %v269 = vpack.c.bf16 %v267, %v265
    %v270 = vpack.c.bf16 %v268, %v266
    %v271 = vld [vmem:[%s4] sm:$0xf]
    %v272 = vld [vmem:[%s4 + $0x4] sm:$0xf]
    %v273 = vld [vmem:[%s4 + $0x8] sm:$0xf]
    %v274 = vld [vmem:[%s4 + $0xc] sm:$0xf]
    %v275 = vld [vmem:[%s4 + $0x10] sm:$0xf]
    %v276 = vld [vmem:[%s4 + $0x14] sm:$0xf]
    %v277 = vld [vmem:[%s4 + $0x18] sm:$0xf]
    %v278 = vld [vmem:[%s4 + $0x1c] sm:$0xf]
    %v279 = vld [vmem:[%s4 + $0x20] sm:$0xf]
    %v280 = vld [vmem:[%s4 + $0x24] sm:$0xf]
    %v281 = vld [vmem:[%s4 + $0x28] sm:$0xf]
    %v282 = vld [vmem:[%s4 + $0x2c] sm:$0xf]
    %v283 = vld [vmem:[%s4 + $0x30] sm:$0xf]
    %v284 = vld [vmem:[%s4 + $0x34] sm:$0xf]
    %v285 = vld [vmem:[%s4 + $0x38] sm:$0xf]
    %v286 = vld [vmem:[%s4 + $0x3c] sm:$0xf]
    %v287 = vld [vmem:[%s4 + $0x40] sm:$0xf]
    %v288 = vld [vmem:[%s4 + $0x44] sm:$0xf]
    %v289 = vld [vmem:[%s4 + $0x48] sm:$0xf]
    %v290 = vld [vmem:[%s4 + $0x4c] sm:$0xf]
    %v291 = vld [vmem:[%s4 + $0x50] sm:$0xf]
    %v292 = vld [vmem:[%s4 + $0x54] sm:$0xf]
    %v293 = vld [vmem:[%s4 + $0x58] sm:$0xf]
    %v294 = vld [vmem:[%s4 + $0x5c] sm:$0xf]
    %v295 = vld [vmem:[%s4 + $0x60] sm:$0xf]
    %v296 = vld [vmem:[%s4 + $0x64] sm:$0xf]
    %v297 = vld [vmem:[%s4 + $0x68] sm:$0xf]
    %v298 = vld [vmem:[%s4 + $0x6c] sm:$0xf]
    %v299 = vld [vmem:[%s4 + $0x70] sm:$0xf]
    %v300 = vld [vmem:[%s4 + $0x74] sm:$0xf]
    %v301 = vld [vmem:[%s4 + $0x78] sm:$0xf]
    %v302 = vld [vmem:[%s4 + $0x7c] sm:$0xf]
    %v303 = vperm.slane %v259, 0
    %v336 = vunpack.c.l.b16 %v271
    %v337 = vunpack.c.l.b16 %v272
    %v338 = vunpack.c.l.b16 %v273
    %v339 = vunpack.c.l.b16 %v274
    %v340 = vunpack.c.l.b16 %v275
    %v341 = vunpack.c.l.b16 %v276
    %v342 = vunpack.c.l.b16 %v277
    %v343 = vunpack.c.l.b16 %v278
    %v344 = vunpack.c.l.b16 %v279
    %v345 = vunpack.c.l.b16 %v280
    %v346 = vunpack.c.l.b16 %v281
    %v347 = vunpack.c.l.b16 %v282
    %v348 = vunpack.c.l.b16 %v283
    %v349 = vunpack.c.l.b16 %v284
    %v350 = vunpack.c.l.b16 %v285
    %v351 = vunpack.c.l.b16 %v286
    %v352 = vunpack.c.l.b16 %v287
    %v353 = vunpack.c.l.b16 %v288
    %v354 = vunpack.c.l.b16 %v289
    %v355 = vunpack.c.l.b16 %v290
    %v356 = vunpack.c.l.b16 %v291
    %v357 = vunpack.c.l.b16 %v292
    %v358 = vunpack.c.l.b16 %v293
    %v359 = vunpack.c.l.b16 %v294
    %v360 = vunpack.c.l.b16 %v295
    %v361 = vunpack.c.l.b16 %v296
    %v362 = vunpack.c.l.b16 %v297
    %v363 = vunpack.c.l.b16 %v298
    %v364 = vunpack.c.l.b16 %v299
    %v365 = vunpack.c.l.b16 %v300
    %v366 = vunpack.c.l.b16 %v301
    %v367 = vunpack.c.l.b16 %v302
    %v368 = vpack.c.b16 %v337, %v336
    %v369 = vpack.c.b16 %v339, %v338
    %v370 = vpack.c.b16 %v341, %v340
    %v371 = vpack.c.b16 %v343, %v342
    %v372 = vpack.c.b16 %v345, %v344
    %v373 = vpack.c.b16 %v347, %v346
    %v374 = vpack.c.b16 %v349, %v348
    %v375 = vpack.c.b16 %v351, %v350
    %v376 = vpack.c.b16 %v353, %v352
    %v377 = vpack.c.b16 %v355, %v354
    %v378 = vpack.c.b16 %v357, %v356
    %v379 = vpack.c.b16 %v359, %v358
    %v380 = vpack.c.b16 %v361, %v360
    %v381 = vpack.c.b16 %v363, %v362
    %v382 = vpack.c.b16 %v365, %v364
    %v383 = vpack.c.b16 %v367, %v366
    %400 = vmatpush.bf16.msra.mxu0 %v375
    %401 = vmatpush.bf16.msra.mxu0 %v374
    %402 = vmatpush.bf16.msra.mxu0 %v373
    %403 = vmatpush.bf16.msra.mxu0 %v372
    %404 = vmatpush.bf16.msra.mxu0 %v371
    %405 = vmatpush.bf16.msra.mxu0 %v370
    %406 = vmatpush.bf16.msra.mxu0 %v369
    %407 = vmatpush.bf16.msra.mxu0 %v368
    %408 = vmatmul.bf16.gmra.mxu0 %v269
    %v409 = vpop.f32.mrf.mxu0
    %v410 = vadd.f32 %v303, %v409
    %v411 = vpop.f32.mrf.mxu0
    %v412 = vadd.f32 %v303, %v411
    %413 = vdwg.mxu0
    %414 = vmatpush.bf16.msra.mxu0 %v383
    %415 = vmatpush.bf16.msra.mxu0 %v382
    %416 = vmatpush.bf16.msra.mxu0 %v381
    %417 = vmatpush.bf16.msra.mxu0 %v380
    %418 = vmatpush.bf16.msra.mxu0 %v379
    %419 = vmatpush.bf16.msra.mxu0 %v378
    %420 = vmatpush.bf16.msra.mxu0 %v377
    %421 = vmatpush.bf16.msra.mxu0 %v376
    %422 = vmatmul.bf16.gmra.mxu0 %v270
    %v423 = vpop.f32.mrf.mxu0
    %v424 = vadd.f32 %v410, %v423
    %v425 = vpop.f32.mrf.mxu0
    %v426 = vadd.f32 %v412, %v425
    %427 = vdwg.mxu0
    %v428 = vmax.f32 %v424, 0.0
    %v429 = vmax.f32 %v426, 0.0
    %v430 = vperm.slane %v259, 3
    %v431 = vmul.f32 %v428, %v430
    %v432 = vmul.f32 %v429, %v430
    %v433 = vperm.slane %v259, 4
    %v434 = vadd.f32 %v431, %v433
    %v435 = vadd.f32 %v432, %v433
    %v436 = vld [vmem:[#allocation5] sm:$0xff]
    %v437 = vld [vmem:[#allocation5 + $0x8] sm:$0xff]
    %v438 = vpack.c.bf16 %v437, %v436
    %v439 = vld [vmem:[#allocation8] sm:$0xf]
    %v440 = vld [vmem:[#allocation8 + $0x4] sm:$0xf]
    %v441 = vld [vmem:[#allocation8 + $0x8] sm:$0xf]
    %v442 = vld [vmem:[#allocation8 + $0xc] sm:$0xf]
    %v443 = vld [vmem:[#allocation8 + $0x10] sm:$0xf]
    %v444 = vld [vmem:[#allocation8 + $0x14] sm:$0xf]
    %v445 = vld [vmem:[#allocation8 + $0x18] sm:$0xf]
    %v446 = vld [vmem:[#allocation8 + $0x1c] sm:$0xf]
    %v447 = vld [vmem:[#allocation8 + $0x20] sm:$0xf]
    %v448 = vld [vmem:[#allocation8 + $0x24] sm:$0xf]
    %v449 = vld [vmem:[#allocation8 + $0x28] sm:$0xf]
    %v450 = vld [vmem:[#allocation8 + $0x2c] sm:$0xf]
    %v451 = vld [vmem:[#allocation8 + $0x30] sm:$0xf]
    %v452 = vld [vmem:[#allocation8 + $0x34] sm:$0xf]
    %v453 = vld [vmem:[#allocation8 + $0x38] sm:$0xf]
    %v454 = vld [vmem:[#allocation8 + $0x3c] sm:$0xf]
    %v455 = vperm.slane %v259, 1
    %v472 = vunpack.c.l.b16 %v439
    %v473 = vunpack.c.l.b16 %v440
    %v474 = vunpack.c.l.b16 %v441
    %v475 = vunpack.c.l.b16 %v442
    %v476 = vunpack.c.l.b16 %v443
    %v477 = vunpack.c.l.b16 %v444
    %v478 = vunpack.c.l.b16 %v445
    %v479 = vunpack.c.l.b16 %v446
    %v480 = vunpack.c.l.b16 %v447
    %v481 = vunpack.c.l.b16 %v448
    %v482 = vunpack.c.l.b16 %v449
    %v483 = vunpack.c.l.b16 %v450
    %v484 = vunpack.c.l.b16 %v451
    %v485 = vunpack.c.l.b16 %v452
    %v486 = vunpack.c.l.b16 %v453
    %v487 = vunpack.c.l.b16 %v454
    %v488 = vpack.c.b16 %v473, %v472
    %v489 = vpack.c.b16 %v475, %v474
    %v490 = vpack.c.b16 %v477, %v476
    %v491 = vpack.c.b16 %v479, %v478
    %v492 = vpack.c.b16 %v481, %v480
    %v493 = vpack.c.b16 %v483, %v482
    %v494 = vpack.c.b16 %v485, %v484
    %v495 = vpack.c.b16 %v487, %v486
    %504 = vmatpush.bf16.msra.mxu0 %v495
    %505 = vmatpush.bf16.msra.mxu0 %v494
    %506 = vmatpush.bf16.msra.mxu0 %v493
    %507 = vmatpush.bf16.msra.mxu0 %v492
    %508 = vmatpush.bf16.msra.mxu0 %v491
    %509 = vmatpush.bf16.msra.mxu0 %v490
    %510 = vmatpush.bf16.msra.mxu0 %v489
    %511 = vmatpush.bf16.msra.mxu0 %v488
    %512 = vmatmul.bf16.gmra.mxu0 %v438
    %v513 = vpop.f32.mrf.mxu0
    %v514 = vadd.f32 %v455, %v513
    %v515 = vpop.f32.mrf.mxu0
    %v516 = vadd.f32 %v455, %v515
    %517 = vdwg.mxu0
    %v518 = vmax.f32 %v514, 0.0
    %v519 = vmax.f32 %v516, 0.0
    %v520 = vperm.slane %v259, 5
    %v521 = vmul.f32 %v518, %v520
    %v522 = vmul.f32 %v519, %v520
    %v523 = vperm.slane %v259, 6
    %v524 = vadd.f32 %v521, %v523
    %v525 = vadd.f32 %v522, %v523
    %v526 = vld [vmem:[#allocation7] sm:$0xff]
    %v527 = vld [vmem:[#allocation7 + $0x8] sm:$0xff]
    %v528 = vpack.c.bf16 %v527, %v526
    %v529 = vld [vmem:[#allocation10] sm:$0xf]
    %v530 = vld [vmem:[#allocation10 + $0x4] sm:$0xf]
    %v531 = vld [vmem:[#allocation10 + $0x8] sm:$0xf]
    %v532 = vld [vmem:[#allocation10 + $0xc] sm:$0xf]
    %v533 = vld [vmem:[#allocation10 + $0x10] sm:$0xf]
    %v534 = vld [vmem:[#allocation10 + $0x14] sm:$0xf]
    %v535 = vld [vmem:[#allocation10 + $0x18] sm:$0xf]
    %v536 = vld [vmem:[#allocation10 + $0x1c] sm:$0xf]
    %v537 = vperm.slane %v259, 2
    %v546 = vunpack.c.l.b16 %v529
    %v547 = vunpack.c.l.b16 %v530
    %v548 = vunpack.c.l.b16 %v531
    %v549 = vunpack.c.l.b16 %v532
    %v550 = vunpack.c.l.b16 %v533
    %v551 = vunpack.c.l.b16 %v534
    %v552 = vunpack.c.l.b16 %v535
    %v553 = vunpack.c.l.b16 %v536
    %v554 = vpack.c.b16 %v547, %v546
    %v555 = vpack.c.b16 %v549, %v548
    %v556 = vpack.c.b16 %v551, %v550
    %v557 = vpack.c.b16 %v553, %v552
    %vm562 = vcmask 523264
    %v564 = vsel %vm562, %v528, 0
    %566 = vmatpush.bf16.msra.mxu0 0
    %567 = vmatpush.bf16.msra.mxu0 0
    %568 = vmatpush.bf16.msra.mxu0 0
    %569 = vmatpush.bf16.msra.mxu0 0
    %570 = vmatpush.bf16.msra.mxu0 %v557
    %571 = vmatpush.bf16.msra.mxu0 %v556
    %572 = vmatpush.bf16.msra.mxu0 %v555
    %573 = vmatpush.bf16.msra.mxu0 %v554
    %574 = vmatmul.bf16.gmra.mxu0 %v564
    %v575 = vpop.f32.mrf.mxu0
    %v576 = vadd.f32 %v537, %v575
    %v577 = vpop.f32.mrf.mxu0
    %v578 = vadd.f32 %v537, %v577
    %579 = vdwg.mxu0
    %v580 = vmax.f32 %v576, 0.0
    %v581 = vmax.f32 %v578, 0.0
    %v582 = vperm.slane %v259, 7
    %v583 = vmul.f32 %v580, %v582
    %v584 = vmul.f32 %v581, %v582
    %v585 = vperm.slane %v260, 0
    %v586 = vadd.f32 %v583, %v585
    %v587 = vadd.f32 %v584, %v585
    %v588 = vpack.c.bf16 %v435, %v434
    %v589 = vpack.c.bf16 %v525, %v524
    %v590 = vpack.c.bf16 %v587, %v586
    %v591 = vld [vmem:[%s8] sm:$0xf]
    %v592 = vld [vmem:[%s8 + $0x4] sm:$0xf]
    %v593 = vld [vmem:[%s8 + $0x8] sm:$0xf]
    %v594 = vld [vmem:[%s8 + $0xc] sm:$0xf]
    %v595 = vld [vmem:[%s8 + $0x10] sm:$0xf]
    %v596 = vld [vmem:[%s8 + $0x14] sm:$0xf]
    %v597 = vld [vmem:[%s8 + $0x18] sm:$0xf]
    %v598 = vld [vmem:[%s8 + $0x1c] sm:$0xf]
    %v599 = vld [vmem:[%s8 + $0x20] sm:$0xf]
    %v600 = vld [vmem:[%s8 + $0x24] sm:$0xf]
    %v601 = vld [vmem:[%s8 + $0x28] sm:$0xf]
    %v602 = vld [vmem:[%s8 + $0x2c] sm:$0xf]
    %v603 = vld [vmem:[%s8 + $0x30] sm:$0xf]
    %v604 = vld [vmem:[%s8 + $0x34] sm:$0xf]
    %v605 = vld [vmem:[%s8 + $0x38] sm:$0xf]
    %v606 = vld [vmem:[%s8 + $0x3c] sm:$0xf]
    %v623 = vunpack.c.l.b16 %v591
    %v624 = vunpack.c.l.b16 %v592
    %v625 = vunpack.c.l.b16 %v593
    %v626 = vunpack.c.l.b16 %v594
    %v627 = vunpack.c.l.b16 %v595
    %v628 = vunpack.c.l.b16 %v596
    %v629 = vunpack.c.l.b16 %v597
    %v630 = vunpack.c.l.b16 %v598
    %v631 = vunpack.c.l.b16 %v599
    %v632 = vunpack.c.l.b16 %v600
    %v633 = vunpack.c.l.b16 %v601
    %v634 = vunpack.c.l.b16 %v602
    %v635 = vunpack.c.l.b16 %v603
    %v636 = vunpack.c.l.b16 %v604
    %v637 = vunpack.c.l.b16 %v605
    %v638 = vunpack.c.l.b16 %v606
    %v639 = vpack.c.b16 %v624, %v623
    %v640 = vpack.c.b16 %v626, %v625
    %v641 = vpack.c.b16 %v628, %v627
    %v642 = vpack.c.b16 %v630, %v629
    %v643 = vpack.c.b16 %v632, %v631
    %v644 = vpack.c.b16 %v634, %v633
    %v645 = vpack.c.b16 %v636, %v635
    %v646 = vpack.c.b16 %v638, %v637
    %655 = vmatpush.bf16.msra.mxu0 %v646
    %656 = vmatpush.bf16.msra.mxu0 %v645
    %657 = vmatpush.bf16.msra.mxu0 %v644
    %658 = vmatpush.bf16.msra.mxu0 %v643
    %659 = vmatpush.bf16.msra.mxu0 %v642
    %660 = vmatpush.bf16.msra.mxu0 %v641
    %661 = vmatpush.bf16.msra.mxu0 %v640
    %662 = vmatpush.bf16.msra.mxu0 %v639
    %663 = vmatmul.bf16.gmra.mxu0 %v588
    %v664 = vpop.f32.mrf.mxu0
    %v665 = vadd.f32 0.0, %v664
    %v666 = vpop.f32.mrf.mxu0
    %v667 = vadd.f32 0.0, %v666
    %668 = vmatmul.bf16.gmra.mxu0 %v589
    %v669 = vpop.f32.mrf.mxu0
    %v670 = vadd.f32 0.0, %v669
    %v671 = vpop.f32.mrf.mxu0
    %v672 = vadd.f32 0.0, %v671
    %673 = vmatmul.bf16.gmra.mxu0 %v590
    %v674 = vpop.f32.mrf.mxu0
    %v675 = vadd.f32 0.0, %v674
    %v676 = vpop.f32.mrf.mxu0
    %v677 = vadd.f32 0.0, %v676
    %678 = vdwg.mxu0
    %v679 = vld [vmem:[%s9] sm:$0xf]
    %v680 = vld [vmem:[%s9 + $0x4] sm:$0xf]
    %v681 = vld [vmem:[%s9 + $0x8] sm:$0xf]
    %v682 = vld [vmem:[%s9 + $0xc] sm:$0xf]
    %v683 = vld [vmem:[%s9 + $0x10] sm:$0xf]
    %v684 = vld [vmem:[%s9 + $0x14] sm:$0xf]
    %v685 = vld [vmem:[%s9 + $0x18] sm:$0xf]
    %v686 = vld [vmem:[%s9 + $0x1c] sm:$0xf]
    %v687 = vld [vmem:[%s9 + $0x20] sm:$0xf]
    %v688 = vld [vmem:[%s9 + $0x24] sm:$0xf]
    %v689 = vld [vmem:[%s9 + $0x28] sm:$0xf]
    %v690 = vld [vmem:[%s9 + $0x2c] sm:$0xf]
    %v691 = vld [vmem:[%s9 + $0x30] sm:$0xf]
    %v692 = vld [vmem:[%s9 + $0x34] sm:$0xf]
    %v693 = vld [vmem:[%s9 + $0x38] sm:$0xf]
    %v694 = vld [vmem:[%s9 + $0x3c] sm:$0xf]
    %v711 = vunpack.c.l.b16 %v679
    %v712 = vunpack.c.l.b16 %v680
    %v713 = vunpack.c.l.b16 %v681
    %v714 = vunpack.c.l.b16 %v682
    %v715 = vunpack.c.l.b16 %v683
    %v716 = vunpack.c.l.b16 %v684
    %v717 = vunpack.c.l.b16 %v685
    %v718 = vunpack.c.l.b16 %v686
    %v719 = vunpack.c.l.b16 %v687
    %v720 = vunpack.c.l.b16 %v688
    %v721 = vunpack.c.l.b16 %v689
    %v722 = vunpack.c.l.b16 %v690
    %v723 = vunpack.c.l.b16 %v691
    %v724 = vunpack.c.l.b16 %v692
    %v725 = vunpack.c.l.b16 %v693
    %v726 = vunpack.c.l.b16 %v694
    %v727 = vpack.c.b16 %v712, %v711
    %v728 = vpack.c.b16 %v714, %v713
    %v729 = vpack.c.b16 %v716, %v715
    %v730 = vpack.c.b16 %v718, %v717
    %v731 = vpack.c.b16 %v720, %v719
    %v732 = vpack.c.b16 %v722, %v721
    %v733 = vpack.c.b16 %v724, %v723
    %v734 = vpack.c.b16 %v726, %v725
    %743 = vmatpush.bf16.msra.mxu0 %v734
    %744 = vmatpush.bf16.msra.mxu0 %v733
    %745 = vmatpush.bf16.msra.mxu0 %v732
    %746 = vmatpush.bf16.msra.mxu0 %v731
    %747 = vmatpush.bf16.msra.mxu0 %v730
    %748 = vmatpush.bf16.msra.mxu0 %v729
    %749 = vmatpush.bf16.msra.mxu0 %v728
    %750 = vmatpush.bf16.msra.mxu0 %v727
    %751 = vmatmul.bf16.gmra.mxu0 %v588
    %v752 = vpop.f32.mrf.mxu0
    %v753 = vadd.f32 0.0, %v752
    %v754 = vpop.f32.mrf.mxu0
    %v755 = vadd.f32 0.0, %v754
    %756 = vmatmul.bf16.gmra.mxu0 %v589
    %v757 = vpop.f32.mrf.mxu0
    %v758 = vadd.f32 0.0, %v757
    %v759 = vpop.f32.mrf.mxu0
    %v760 = vadd.f32 0.0, %v759
    %761 = vmatmul.bf16.gmra.mxu0 %v590
    %v762 = vpop.f32.mrf.mxu0
    %v763 = vadd.f32 0.0, %v762
    %v764 = vpop.f32.mrf.mxu0
    %v765 = vadd.f32 0.0, %v764
    %766 = vdwg.mxu0
    %v767 = vadd.f32 %v665, %v763
    %v768 = vadd.f32 %v667, %v765
    %v769 = vperm.slane %v261, 0
    %v770 = vadd.f32 %v767, %v769
    %v771 = vadd.f32 %v768, %v769
    %v772 = vsel %vm562, %v770, -inf
    %773 = vmax.xlane.f32.xlu0 %v772
    %v774 = vpop.xlane.xlu0 %773
    %v775 = vsel %vm562, %v771, -inf
    %776 = vmax.xlane.f32.xlu0 %v775
    %v777 = vpop.xlane.xlu0 %776
    %v778 = vsub.f32 %v770, %v774
    %v779 = vsub.f32 %v771, %v777
    %v780 = vmul.f32 %v778, 1.442695
    %v781 = vpow.pop %v780
    %v782 = vmul.f32 %v779, 1.442695
    %v783 = vpow.pop %v782
    %v784 = vsel %vm562, %v781, 0.0
    %785 = vadd.xlane.f32.xlu0 %v784
    %v786 = vpop.xlane.xlu0 %785
    %v787 = vsel %vm562, %v783, 0.0
    %788 = vadd.xlane.f32.xlu0 %v787
    %v789 = vpop.xlane.xlu0 %788
    %v790 = vrcp.pop %v786
    %v791 = vrcp.pop %v789
    %v792 = vmul.f32 %v781, %v790
    %v793 = vmul.f32 %v783, %v791
    %v794 = vadd.f32 %v665, %v758
    %v795 = vadd.f32 %v667, %v760
    %v796 = vadd.f32 %v794, %v769
    %v797 = vadd.f32 %v795, %v769
    %v798 = vsel %vm562, %v796, -inf
    %799 = vmax.xlane.f32.xlu0 %v798
    %v800 = vpop.xlane.xlu0 %799
    %v801 = vsel %vm562, %v797, -inf
    %802 = vmax.xlane.f32.xlu0 %v801
    %v803 = vpop.xlane.xlu0 %802
    %v804 = vsub.f32 %v796, %v800
    %v805 = vsub.f32 %v797, %v803
    %v806 = vmul.f32 %v804, 1.442695
    %v807 = vpow.pop %v806
    %v808 = vmul.f32 %v805, 1.442695
    %v809 = vpow.pop %v808
    %v810 = vsel %vm562, %v807, 0.0
    %811 = vadd.xlane.f32.xlu0 %v810
    %v812 = vpop.xlane.xlu0 %811
    %v813 = vsel %vm562, %v809, 0.0
    %814 = vadd.xlane.f32.xlu0 %v813
    %v815 = vpop.xlane.xlu0 %814
    %v816 = vrcp.pop %v812
    %v817 = vrcp.pop %v815
    %v818 = vmul.f32 %v807, %v816
    %v819 = vmul.f32 %v809, %v817
    %v820 = vadd.f32 %v792, %v818
    %v821 = vadd.f32 %v793, %v819
    %v822 = vadd.f32 %v675, %v753
    %v823 = vadd.f32 %v677, %v755
    %v824 = vadd.f32 %v822, %v769
    %v825 = vadd.f32 %v823, %v769
    %v826 = vsel %vm562, %v824, -inf
    %827 = vmax.xlane.f32.xlu0 %v826
    %v828 = vpop.xlane.xlu0 %827
    %v829 = vsel %vm562, %v825, -inf
    %830 = vmax.xlane.f32.xlu0 %v829
    %v831 = vpop.xlane.xlu0 %830
    %v832 = vsub.f32 %v824, %v828
    %v833 = vsub.f32 %v825, %v831
    %v834 = vmul.f32 %v832, 1.442695
    %v835 = vpow.pop %v834
    %v836 = vmul.f32 %v833, 1.442695
    %v837 = vpow.pop %v836
    %v838 = vsel %vm562, %v835, 0.0
    %839 = vadd.xlane.f32.xlu0 %v838
    %v840 = vpop.xlane.xlu0 %839
    %v841 = vsel %vm562, %v837, 0.0
    %842 = vadd.xlane.f32.xlu0 %v841
    %v843 = vpop.xlane.xlu0 %842
    %v844 = vrcp.pop %v840
    %v845 = vrcp.pop %v843
    %v846 = vmul.f32 %v835, %v844
    %v847 = vmul.f32 %v837, %v845
    %v848 = vadd.f32 %v675, %v758
    %v849 = vadd.f32 %v677, %v760
    %v850 = vadd.f32 %v848, %v769
    %v851 = vadd.f32 %v849, %v769
    %v852 = vsel %vm562, %v850, -inf
    %853 = vmax.xlane.f32.xlu0 %v852
    %v854 = vpop.xlane.xlu0 %853
    %v855 = vsel %vm562, %v851, -inf
    %856 = vmax.xlane.f32.xlu0 %v855
    %v857 = vpop.xlane.xlu0 %856
    %v858 = vsub.f32 %v850, %v854
    %v859 = vsub.f32 %v851, %v857
    %v860 = vmul.f32 %v858, 1.442695
    %v861 = vpow.pop %v860
    %v862 = vmul.f32 %v859, 1.442695
    %v863 = vpow.pop %v862
    %v864 = vsel %vm562, %v861, 0.0
    %865 = vadd.xlane.f32.xlu0 %v864
    %v866 = vpop.xlane.xlu0 %865
    %v867 = vsel %vm562, %v863, 0.0
    %868 = vadd.xlane.f32.xlu0 %v867
    %v869 = vpop.xlane.xlu0 %868
    %v870 = vrcp.pop %v866
    %v871 = vrcp.pop %v869
    %v872 = vmul.f32 %v861, %v870
    %v873 = vmul.f32 %v863, %v871
    %v874 = vadd.f32 %v846, %v872
    %v875 = vadd.f32 %v847, %v873
    %v876 = vadd.f32 %v670, %v753
    %v877 = vadd.f32 %v672, %v755
    %v878 = vadd.f32 %v876, %v769
    %v879 = vadd.f32 %v877, %v769
    %v880 = vsel %vm562, %v878, -inf
    %881 = vmax.xlane.f32.xlu0 %v880
    %v882 = vpop.xlane.xlu0 %881
    %v883 = vsel %vm562, %v879, -inf
    %884 = vmax.xlane.f32.xlu0 %v883
    %v885 = vpop.xlane.xlu0 %884
    %v886 = vsub.f32 %v878, %v882
    %v887 = vsub.f32 %v879, %v885
    %v888 = vmul.f32 %v886, 1.442695
    %v889 = vpow.pop %v888
    %v890 = vmul.f32 %v887, 1.442695
    %v891 = vpow.pop %v890
    %v892 = vsel %vm562, %v889, 0.0
    %893 = vadd.xlane.f32.xlu0 %v892
    %v894 = vpop.xlane.xlu0 %893
    %v895 = vsel %vm562, %v891, 0.0
    %896 = vadd.xlane.f32.xlu0 %v895
    %v897 = vpop.xlane.xlu0 %896
    %v898 = vrcp.pop %v894
    %v899 = vrcp.pop %v897
    %v900 = vmul.f32 %v889, %v898
    %v901 = vmul.f32 %v891, %v899
    %v902 = vadd.f32 %v670, %v763
    %v903 = vadd.f32 %v672, %v765
    %v904 = vadd.f32 %v902, %v769
    %v905 = vadd.f32 %v903, %v769
    %v906 = vsel %vm562, %v904, -inf
    %907 = vmax.xlane.f32.xlu0 %v906
    %v908 = vpop.xlane.xlu0 %907
    %v909 = vsel %vm562, %v905, -inf
    %910 = vmax.xlane.f32.xlu0 %v909
    %v911 = vpop.xlane.xlu0 %910
    %v912 = vsub.f32 %v904, %v908
    %v913 = vsub.f32 %v905, %v911
    %v914 = vmul.f32 %v912, 1.442695
    %v915 = vpow.pop %v914
    %v916 = vmul.f32 %v913, 1.442695
    %v917 = vpow.pop %v916
    %v918 = vsel %vm562, %v915, 0.0
    %919 = vadd.xlane.f32.xlu0 %v918
    %v920 = vpop.xlane.xlu0 %919
    %v921 = vsel %vm562, %v917, 0.0
    %922 = vadd.xlane.f32.xlu0 %v921
    %v923 = vpop.xlane.xlu0 %922
    %v924 = vrcp.pop %v920
    %v925 = vrcp.pop %v923
    %v926 = vmul.f32 %v915, %v924
    %v927 = vmul.f32 %v917, %v925
    %v928 = vadd.f32 %v900, %v926
    %v929 = vadd.f32 %v901, %v927
    %v930 = vpack.c.bf16 %v821, %v820
    %v931 = vpack.c.bf16 %v875, %v874
    %v932 = vpack.c.bf16 %v929, %v928
    %v933 = vld [vmem:[#allocation13] sm:$0xf]
    %v934 = vld [vmem:[#allocation13 + $0x4] sm:$0xf]
    %v935 = vld [vmem:[#allocation13 + $0x8] sm:$0xf]
    %v936 = vld [vmem:[#allocation13 + $0xc] sm:$0xf]
    %v937 = vld [vmem:[#allocation13 + $0x10] sm:$0xf]
    %v938 = vld [vmem:[#allocation13 + $0x14] sm:$0xf]
    %v939 = vld [vmem:[#allocation13 + $0x18] sm:$0xf]
    %v940 = vld [vmem:[#allocation13 + $0x1c] sm:$0xf]
    %v941 = vperm.slane %v261, 1
    %v950 = vunpack.c.l.b16 %v933
    %v951 = vunpack.c.l.b16 %v934
    %v952 = vunpack.c.l.b16 %v935
    %v953 = vunpack.c.l.b16 %v936
    %v954 = vunpack.c.l.b16 %v937
    %v955 = vunpack.c.l.b16 %v938
    %v956 = vunpack.c.l.b16 %v939
    %v957 = vunpack.c.l.b16 %v940
    %v958 = vpack.c.b16 %v951, %v950
    %v959 = vpack.c.b16 %v953, %v952
    %v960 = vpack.c.b16 %v955, %v954
    %v961 = vpack.c.b16 %v957, %v956
    %v967 = vsel %vm562, %v930, 0
    %v970 = vsel %vm562, %v931, 0
    %v973 = vsel %vm562, %v932, 0
    %975 = vmatpush.bf16.msra.mxu0 0
    %976 = vmatpush.bf16.msra.mxu0 0
    %977 = vmatpush.bf16.msra.mxu0 0
    %978 = vmatpush.bf16.msra.mxu0 0
    %979 = vmatpush.bf16.msra.mxu0 %v961
    %980 = vmatpush.bf16.msra.mxu0 %v960
    %981 = vmatpush.bf16.msra.mxu0 %v959
    %982 = vmatpush.bf16.msra.mxu0 %v958
    %983 = vmatmul.bf16.gmra.mxu0 %v967
    %v984 = vpop.f32.mrf.mxu0
    %v985 = vadd.f32 %v941, %v984
    %v986 = vpop.f32.mrf.mxu0
    %v987 = vadd.f32 %v941, %v986
    %988 = vmatmul.bf16.gmra.mxu0 %v970
    %v989 = vpop.f32.mrf.mxu0
    %v990 = vadd.f32 %v941, %v989
    %v991 = vpop.f32.mrf.mxu0
    %v992 = vadd.f32 %v941, %v991
    %993 = vmatmul.bf16.gmra.mxu0 %v973
    %v994 = vpop.f32.mrf.mxu0
    %v995 = vadd.f32 %v941, %v994
    %v996 = vpop.f32.mrf.mxu0
    %v997 = vadd.f32 %v941, %v996
    %998 = vdwg.mxu0
    %999 = vmax.xlane.f32.xlu0 %v985
    %v1000 = vpop.xlane.xlu0 %999
    %1001 = vmax.xlane.f32.xlu0 %v987
    %v1002 = vpop.xlane.xlu0 %1001
    %1003 = vmax.xlane.f32.xlu0 %v990
    %v1004 = vpop.xlane.xlu0 %1003
    %1005 = vmax.xlane.f32.xlu0 %v992
    %v1006 = vpop.xlane.xlu0 %1005
    %1007 = vmax.xlane.f32.xlu0 %v995
    %v1008 = vpop.xlane.xlu0 %1007
    %1009 = vmax.xlane.f32.xlu0 %v997
    %v1010 = vpop.xlane.xlu0 %1009
    %v1011 = vsub.f32 %v985, %v1000
    %v1012 = vsub.f32 %v987, %v1002
    %v1013 = vsub.f32 %v990, %v1004
    %v1014 = vsub.f32 %v992, %v1006
    %v1015 = vsub.f32 %v995, %v1008
    %v1016 = vsub.f32 %v997, %v1010
    %v1017 = vmul.f32 %v1011, 1.442695
    %v1018 = vpow.pop %v1017
    %v1019 = vmul.f32 %v1012, 1.442695
    %v1020 = vpow.pop %v1019
    %v1021 = vmul.f32 %v1013, 1.442695
    %v1022 = vpow.pop %v1021
    %v1023 = vmul.f32 %v1014, 1.442695
    %v1024 = vpow.pop %v1023
    %v1025 = vmul.f32 %v1015, 1.442695
    %v1026 = vpow.pop %v1025
    %v1027 = vmul.f32 %v1016, 1.442695
    %v1028 = vpow.pop %v1027
    %1029 = vadd.xlane.f32.xlu0 %v1018
    %v1030 = vpop.xlane.xlu0 %1029
    %1031 = vadd.xlane.f32.xlu0 %v1020
    %v1032 = vpop.xlane.xlu0 %1031
    %1033 = vadd.xlane.f32.xlu0 %v1022
    %v1034 = vpop.xlane.xlu0 %1033
    %1035 = vadd.xlane.f32.xlu0 %v1024
    %v1036 = vpop.xlane.xlu0 %1035
    %1037 = vadd.xlane.f32.xlu0 %v1026
    %v1038 = vpop.xlane.xlu0 %1037
    %1039 = vadd.xlane.f32.xlu0 %v1028
    %v1040 = vpop.xlane.xlu0 %1039
    %v1041 = vrcp.pop %v1030
    %v1042 = vrcp.pop %v1032
    %v1043 = vrcp.pop %v1034
    %v1044 = vrcp.pop %v1036
    %v1045 = vrcp.pop %v1038
    %v1046 = vrcp.pop %v1040
    %v1047 = vmul.f32 %v1018, %v1041
    %v1048 = vmul.f32 %v1020, %v1042
    %v1049 = vmul.f32 %v1022, %v1043
    %v1050 = vmul.f32 %v1024, %v1044
    %v1051 = vmul.f32 %v1026, %v1045
    %v1052 = vmul.f32 %v1028, %v1046
    %v1053 = vmul.f32 %v434, %v1047
    %v1054 = vmul.f32 %v435, %v1048
    %v1055 = vmul.f32 %v586, %v1049
    %v1056 = vmul.f32 %v587, %v1050
    %v1057 = vmul.f32 %v524, %v1051
    %v1058 = vmul.f32 %v525, %v1052
    %v1059 = vpack.c.bf16 %v1054, %v1053
    %v1060 = vpack.c.bf16 %v1056, %v1055
    %v1061 = vpack.c.bf16 %v1058, %v1057
    %v1062 = vld [vmem:[#allocation14] sm:$0xff]
    %v1063 = vld [vmem:[#allocation14 + $0x8] sm:$0xff]
    %v1064 = vld [vmem:[#allocation14 + $0x10] sm:$0xff]
    %v1065 = vld [vmem:[#allocation14 + $0x18] sm:$0xff]
    %v1066 = vld [vmem:[#allocation14 + $0x20] sm:$0xff]
    %v1067 = vld [vmem:[#allocation14 + $0x28] sm:$0xff]
    %v1068 = vld [vmem:[#allocation14 + $0x30] sm:$0xff]
    %v1069 = vld [vmem:[#allocation14 + $0x38] sm:$0xff]
    %v1070 = vld [vmem:[#allocation14 + $0x40] sm:$0xff]
    %v1071 = vld [vmem:[#allocation14 + $0x48] sm:$0xff]
    %v1072 = vld [vmem:[#allocation14 + $0x50] sm:$0xff]
    %v1073 = vld [vmem:[#allocation14 + $0x58] sm:$0xff]
    %v1074 = vld [vmem:[#allocation14 + $0x60] sm:$0xff]
    %v1075 = vld [vmem:[#allocation14 + $0x68] sm:$0xff]
    %v1076 = vld [vmem:[#allocation14 + $0x70] sm:$0xff]
    %v1077 = vld [vmem:[#allocation14 + $0x78] sm:$0xff]
    %v1078 = vld [vmem:[#allocation14 + $0x80] sm:$0xff]
    %v1079 = vld [vmem:[#allocation14 + $0x88] sm:$0xff]
    %v1080 = vld [vmem:[#allocation14 + $0x90] sm:$0xff]
    %v1081 = vld [vmem:[#allocation14 + $0x98] sm:$0xff]
    %v1082 = vld [vmem:[#allocation14 + $0xa0] sm:$0xff]
    %v1083 = vld [vmem:[#allocation14 + $0xa8] sm:$0xff]
    %v1084 = vld [vmem:[#allocation14 + $0xb0] sm:$0xff]
    %v1085 = vld [vmem:[#allocation14 + $0xb8] sm:$0xff]
    %v1086 = vld [vmem:[#allocation14 + $0xc0] sm:$0xff]
    %v1087 = vld [vmem:[#allocation14 + $0xc8] sm:$0xff]
    %v1088 = vld [vmem:[#allocation14 + $0xd0] sm:$0xff]
    %v1089 = vld [vmem:[#allocation14 + $0xd8] sm:$0xff]
    %v1090 = vld [vmem:[#allocation14 + $0xe0] sm:$0xff]
    %v1091 = vld [vmem:[#allocation14 + $0xe8] sm:$0xff]
    %v1092 = vld [vmem:[#allocation14 + $0xf0] sm:$0xff]
    %v1093 = vld [vmem:[#allocation14 + $0xf8] sm:$0xff]
    %v1094 = vld [vmem:[#allocation14 + $0x100] sm:$0xff]
    %v1095 = vld [vmem:[#allocation14 + $0x108] sm:$0xff]
    %v1096 = vld [vmem:[#allocation14 + $0x110] sm:$0xff]
    %v1097 = vld [vmem:[#allocation14 + $0x118] sm:$0xff]
    %v1098 = vld [vmem:[#allocation14 + $0x120] sm:$0xff]
    %v1099 = vld [vmem:[#allocation14 + $0x128] sm:$0xff]
    %v1100 = vld [vmem:[#allocation14 + $0x130] sm:$0xff]
    %v1101 = vld [vmem:[#allocation14 + $0x138] sm:$0xff]
    %v1102 = vld [vmem:[#allocation14 + $0x140] sm:$0xff]
    %v1103 = vld [vmem:[#allocation14 + $0x148] sm:$0xff]
    %v1104 = vld [vmem:[#allocation14 + $0x150] sm:$0xff]
    %v1105 = vld [vmem:[#allocation14 + $0x158] sm:$0xff]
    %v1106 = vld [vmem:[#allocation14 + $0x160] sm:$0xff]
    %v1107 = vld [vmem:[#allocation14 + $0x168] sm:$0xff]
    %v1108 = vld [vmem:[#allocation14 + $0x170] sm:$0xff]
    %v1109 = vld [vmem:[#allocation14 + $0x178] sm:$0xff]
    %v1110 = vld [vmem:[%s3] sm:$0xff]
    %v1111 = vld [vmem:[%s3 + $0x8] sm:$0xff]
    %v1112 = vpack.c.bf16 %v1111, %v1110
    %v1113 = vld [vmem:[#allocation16] sm:$0xff]
    %v1115 = vunpack.c.l.b16 %v1113
    %v1116 = vunpack.c.h.b16 %v1113
    %v1117 = vpack.c.b16 %v1115, %v1115
    %v1118 = vpack.c.b16 %v1116, %v1116
    %vm1119 = vcmask 64512
    %v1121 = vsel %vm1119, %v1112, 0
    %vm1123 = vcmask 1043456
    %v1125 = vsel %vm1123, %v1117, 0
    %v1128 = vsel %vm1123, %v1118, 0
    %1130 = vmatpush.bf16.msra.mxu0 0
    %1131 = vmatpush.bf16.msra.mxu0 0
    %1132 = vmatpush.bf16.msra.mxu0 0
    %1133 = vmatpush.bf16.msra.mxu0 0
    %1134 = vmatpush.bf16.msra.mxu0 0
    %1135 = vmatpush.bf16.msra.mxu0 0
    %1136 = vmatpush.bf16.msra.mxu0 0
    %1137 = vmatpush.bf16.msra.mxu0 %v1125
    %1138 = vmatmul.bf16.gmra.mxu0 %v1121
    %v1139 = vpop.f32.mrf.mxu0
    %v1140 = vadd.f32 0.0, %v1139
    %v1141 = vpop.f32.mrf.mxu0
    %v1142 = vadd.f32 0.0, %v1141
    %1143 = vdwg.mxu0
    %1144 = vmatpush.bf16.msra.mxu0 0
    %1145 = vmatpush.bf16.msra.mxu0 0
    %1146 = vmatpush.bf16.msra.mxu0 0
    %1147 = vmatpush.bf16.msra.mxu0 0
    %1148 = vmatpush.bf16.msra.mxu0 0
    %1149 = vmatpush.bf16.msra.mxu0 0
    %1150 = vmatpush.bf16.msra.mxu0 0
    %1151 = vmatpush.bf16.msra.mxu0 %v1128
    %1152 = vmatmul.bf16.gmra.mxu0 %v1121
    %v1153 = vpop.f32.mrf.mxu0
    %v1154 = vadd.f32 0.0, %v1153
    %v1155 = vpop.f32.mrf.mxu0
    %v1156 = vadd.f32 0.0, %v1155
    %1157 = vdwg.mxu0
    %v1206 = vunpack.c.l.b16 %v1062
    %v1207 = vunpack.c.h.b16 %v1062
    %v1208 = vunpack.c.l.b16 %v1063
    %v1209 = vunpack.c.h.b16 %v1063
    %v1210 = vunpack.c.l.b16 %v1064
    %v1211 = vunpack.c.h.b16 %v1064
    %v1212 = vunpack.c.l.b16 %v1065
    %v1213 = vunpack.c.h.b16 %v1065
    %v1214 = vunpack.c.l.b16 %v1066
    %v1215 = vunpack.c.h.b16 %v1066
    %v1216 = vunpack.c.l.b16 %v1067
    %v1217 = vunpack.c.h.b16 %v1067
    %v1218 = vunpack.c.l.b16 %v1068
    %v1219 = vunpack.c.h.b16 %v1068
    %v1220 = vunpack.c.l.b16 %v1069
    %v1221 = vunpack.c.h.b16 %v1069
    %v1222 = vunpack.c.l.b16 %v1070
    %v1223 = vunpack.c.h.b16 %v1070
    %v1224 = vunpack.c.l.b16 %v1071
    %v1225 = vunpack.c.h.b16 %v1071
    %v1226 = vunpack.c.l.b16 %v1072
    %v1227 = vunpack.c.h.b16 %v1072
    %v1228 = vunpack.c.l.b16 %v1073
    %v1229 = vunpack.c.h.b16 %v1073
    %v1230 = vunpack.c.l.b16 %v1074
    %v1231 = vunpack.c.h.b16 %v1074
    %v1232 = vunpack.c.l.b16 %v1075
    %v1233 = vunpack.c.h.b16 %v1075
    %v1234 = vunpack.c.l.b16 %v1076
    %v1235 = vunpack.c.h.b16 %v1076
    %v1236 = vunpack.c.l.b16 %v1077
    %v1237 = vunpack.c.h.b16 %v1077
    %v1238 = vunpack.c.l.b16 %v1078
    %v1239 = vunpack.c.h.b16 %v1078
    %v1240 = vunpack.c.l.b16 %v1079
    %v1241 = vunpack.c.h.b16 %v1079
    %v1242 = vunpack.c.l.b16 %v1080
    %v1243 = vunpack.c.h.b16 %v1080
    %v1244 = vunpack.c.l.b16 %v1081
    %v1245 = vunpack.c.h.b16 %v1081
    %v1246 = vunpack.c.l.b16 %v1082
    %v1247 = vunpack.c.h.b16 %v1082
    %v1248 = vunpack.c.l.b16 %v1083
    %v1249 = vunpack.c.h.b16 %v1083
    %v1250 = vunpack.c.l.b16 %v1084
    %v1251 = vunpack.c.h.b16 %v1084
    %v1252 = vunpack.c.l.b16 %v1085
    %v1253 = vunpack.c.h.b16 %v1085
    %v1254 = vunpack.c.l.b16 %v1086
    %v1255 = vunpack.c.h.b16 %v1086
    %v1256 = vunpack.c.l.b16 %v1087
    %v1257 = vunpack.c.h.b16 %v1087
    %v1258 = vunpack.c.l.b16 %v1088
    %v1259 = vunpack.c.h.b16 %v1088
    %v1260 = vunpack.c.l.b16 %v1089
    %v1261 = vunpack.c.h.b16 %v1089
    %v1262 = vunpack.c.l.b16 %v1090
    %v1263 = vunpack.c.h.b16 %v1090
    %v1264 = vunpack.c.l.b16 %v1091
    %v1265 = vunpack.c.h.b16 %v1091
    %v1266 = vunpack.c.l.b16 %v1092
    %v1267 = vunpack.c.h.b16 %v1092
    %v1268 = vunpack.c.l.b16 %v1093
    %v1269 = vunpack.c.h.b16 %v1093
    %v1270 = vunpack.c.l.b16 %v1094
    %v1271 = vunpack.c.h.b16 %v1094
    %v1272 = vunpack.c.l.b16 %v1095
    %v1273 = vunpack.c.h.b16 %v1095
    %v1274 = vunpack.c.l.b16 %v1096
    %v1275 = vunpack.c.h.b16 %v1096
    %v1276 = vunpack.c.l.b16 %v1097
    %v1277 = vunpack.c.h.b16 %v1097
    %v1278 = vunpack.c.l.b16 %v1098
    %v1279 = vunpack.c.h.b16 %v1098
    %v1280 = vunpack.c.l.b16 %v1099
    %v1281 = vunpack.c.h.b16 %v1099
    %v1282 = vunpack.c.l.b16 %v1100
    %v1283 = vunpack.c.h.b16 %v1100
    %v1284 = vunpack.c.l.b16 %v1101
    %v1285 = vunpack.c.h.b16 %v1101
    %v1286 = vunpack.c.l.b16 %v1102
    %v1287 = vunpack.c.h.b16 %v1102
    %v1288 = vunpack.c.l.b16 %v1103
    %v1289 = vunpack.c.h.b16 %v1103
    %v1290 = vunpack.c.l.b16 %v1104
    %v1291 = vunpack.c.h.b16 %v1104
    %v1292 = vunpack.c.l.b16 %v1105
    %v1293 = vunpack.c.h.b16 %v1105
    %v1294 = vunpack.c.l.b16 %v1106
    %v1295 = vunpack.c.h.b16 %v1106
    %v1296 = vunpack.c.l.b16 %v1107
    %v1297 = vunpack.c.h.b16 %v1107
    %v1298 = vunpack.c.l.b16 %v1108
    %v1299 = vunpack.c.h.b16 %v1108
    %v1300 = vunpack.c.l.b16 %v1109
    %v1301 = vunpack.c.h.b16 %v1109
    %v1302 = vpack.c.b16 %v1208, %v1206
    %v1303 = vpack.c.b16 %v1209, %v1207
    %v1304 = vpack.c.b16 %v1212, %v1210
    %v1305 = vpack.c.b16 %v1213, %v1211
    %v1306 = vpack.c.b16 %v1216, %v1214
    %v1307 = vpack.c.b16 %v1217, %v1215
    %v1308 = vpack.c.b16 %v1220, %v1218
    %v1309 = vpack.c.b16 %v1221, %v1219
    %v1310 = vpack.c.b16 %v1224, %v1222
    %v1311 = vpack.c.b16 %v1225, %v1223
    %v1312 = vpack.c.b16 %v1228, %v1226
    %v1313 = vpack.c.b16 %v1229, %v1227
    %v1314 = vpack.c.b16 %v1232, %v1230
    %v1315 = vpack.c.b16 %v1233, %v1231
    %v1316 = vpack.c.b16 %v1236, %v1234
    %v1317 = vpack.c.b16 %v1237, %v1235
    %v1318 = vpack.c.b16 %v1240, %v1238
    %v1319 = vpack.c.b16 %v1241, %v1239
    %v1320 = vpack.c.b16 %v1244, %v1242
    %v1321 = vpack.c.b16 %v1245, %v1243
    %v1322 = vpack.c.b16 %v1248, %v1246
    %v1323 = vpack.c.b16 %v1249, %v1247
    %v1324 = vpack.c.b16 %v1252, %v1250
    %v1325 = vpack.c.b16 %v1253, %v1251
    %v1326 = vpack.c.b16 %v1256, %v1254
    %v1327 = vpack.c.b16 %v1257, %v1255
    %v1328 = vpack.c.b16 %v1260, %v1258
    %v1329 = vpack.c.b16 %v1261, %v1259
    %v1330 = vpack.c.b16 %v1264, %v1262
    %v1331 = vpack.c.b16 %v1265, %v1263
    %v1332 = vpack.c.b16 %v1268, %v1266
    %v1333 = vpack.c.b16 %v1269, %v1267
    %v1334 = vpack.c.b16 %v1272, %v1270
    %v1335 = vpack.c.b16 %v1273, %v1271
    %v1336 = vpack.c.b16 %v1276, %v1274
    %v1337 = vpack.c.b16 %v1277, %v1275
    %v1338 = vpack.c.b16 %v1280, %v1278
    %v1339 = vpack.c.b16 %v1281, %v1279
    %v1340 = vpack.c.b16 %v1284, %v1282
    %v1341 = vpack.c.b16 %v1285, %v1283
    %v1342 = vpack.c.b16 %v1288, %v1286
    %v1343 = vpack.c.b16 %v1289, %v1287
    %v1344 = vpack.c.b16 %v1292, %v1290
    %v1345 = vpack.c.b16 %v1293, %v1291
    %v1346 = vpack.c.b16 %v1296, %v1294
    %v1347 = vpack.c.b16 %v1297, %v1295
    %v1348 = vpack.c.b16 %v1300, %v1298
    %v1349 = vpack.c.b16 %v1301, %v1299
    %1398 = vmatpush.bf16.msra.mxu0 %v1316
    %1399 = vmatpush.bf16.msra.mxu0 %v1314
    %1400 = vmatpush.bf16.msra.mxu0 %v1312
    %1401 = vmatpush.bf16.msra.mxu0 %v1310
    %1402 = vmatpush.bf16.msra.mxu0 %v1308
    %1403 = vmatpush.bf16.msra.mxu0 %v1306
    %1404 = vmatpush.bf16.msra.mxu0 %v1304
    %1405 = vmatpush.bf16.msra.mxu0 %v1302
    %1406 = vmatmul.bf16.gmra.mxu0 %v1059
    %v1407 = vpop.f32.mrf.mxu0
    %v1408 = vadd.f32 %v1140, %v1407
    %v1409 = vpop.f32.mrf.mxu0
    %v1410 = vadd.f32 %v1142, %v1409
    %1411 = vdwg.mxu0
    %1412 = vmatpush.bf16.msra.mxu0 %v1332
    %1413 = vmatpush.bf16.msra.mxu0 %v1330
    %1414 = vmatpush.bf16.msra.mxu0 %v1328
    %1415 = vmatpush.bf16.msra.mxu0 %v1326
    %1416 = vmatpush.bf16.msra.mxu0 %v1324
    %1417 = vmatpush.bf16.msra.mxu0 %v1322
    %1418 = vmatpush.bf16.msra.mxu0 %v1320
    %1419 = vmatpush.bf16.msra.mxu0 %v1318
    %1420 = vmatmul.bf16.gmra.mxu0 %v1060
    %v1421 = vpop.f32.mrf.mxu0
    %v1422 = vadd.f32 %v1408, %v1421
    %v1423 = vpop.f32.mrf.mxu0
    %v1424 = vadd.f32 %v1410, %v1423
    %1425 = vdwg.mxu0
    %1426 = vmatpush.bf16.msra.mxu0 %v1348
    %1427 = vmatpush.bf16.msra.mxu0 %v1346
    %1428 = vmatpush.bf16.msra.mxu0 %v1344
    %1429 = vmatpush.bf16.msra.mxu0 %v1342
    %1430 = vmatpush.bf16.msra.mxu0 %v1340
    %1431 = vmatpush.bf16.msra.mxu0 %v1338
    %1432 = vmatpush.bf16.msra.mxu0 %v1336
    %1433 = vmatpush.bf16.msra.mxu0 %v1334
    %1434 = vmatmul.bf16.gmra.mxu0 %v1061
    %v1435 = vpop.f32.mrf.mxu0
    %v1436 = vadd.f32 %v1422, %v1435
    %v1437 = vpop.f32.mrf.mxu0
    %v1438 = vadd.f32 %v1424, %v1437
    %1439 = vdwg.mxu0
    %1440 = vmatpush.bf16.msra.mxu0 %v1317
    %1441 = vmatpush.bf16.msra.mxu0 %v1315
    %1442 = vmatpush.bf16.msra.mxu0 %v1313
    %1443 = vmatpush.bf16.msra.mxu0 %v1311
    %1444 = vmatpush.bf16.msra.mxu0 %v1309
    %1445 = vmatpush.bf16.msra.mxu0 %v1307
    %1446 = vmatpush.bf16.msra.mxu0 %v1305
    %1447 = vmatpush.bf16.msra.mxu0 %v1303
    %1448 = vmatmul.bf16.gmra.mxu0 %v1059
    %v1449 = vpop.f32.mrf.mxu0
    %v1450 = vadd.f32 %v1154, %v1449
    %v1451 = vpop.f32.mrf.mxu0
    %v1452 = vadd.f32 %v1156, %v1451
    %1453 = vdwg.mxu0
    %1454 = vmatpush.bf16.msra.mxu0 %v1333
    %1455 = vmatpush.bf16.msra.mxu0 %v1331
    %1456 = vmatpush.bf16.msra.mxu0 %v1329
    %1457 = vmatpush.bf16.msra.mxu0 %v1327
    %1458 = vmatpush.bf16.msra.mxu0 %v1325
    %1459 = vmatpush.bf16.msra.mxu0 %v1323
    %1460 = vmatpush.bf16.msra.mxu0 %v1321
    %1461 = vmatpush.bf16.msra.mxu0 %v1319
    %1462 = vmatmul.bf16.gmra.mxu0 %v1060
    %v1463 = vpop.f32.mrf.mxu0
    %v1464 = vadd.f32 %v1450, %v1463
    %v1465 = vpop.f32.mrf.mxu0
    %v1466 = vadd.f32 %v1452, %v1465
    %1467 = vdwg.mxu0
    %1468 = vmatpush.bf16.msra.mxu0 %v1349
    %1469 = vmatpush.bf16.msra.mxu0 %v1347
    %1470 = vmatpush.bf16.msra.mxu0 %v1345
    %1471 = vmatpush.bf16.msra.mxu0 %v1343
    %1472 = vmatpush.bf16.msra.mxu0 %v1341
    %1473 = vmatpush.bf16.msra.mxu0 %v1339
    %1474 = vmatpush.bf16.msra.mxu0 %v1337
    %1475 = vmatpush.bf16.msra.mxu0 %v1335
    %1476 = vmatmul.bf16.gmra.mxu0 %v1061
    %v1477 = vpop.f32.mrf.mxu0
    %v1478 = vadd.f32 %v1464, %v1477
    %v1479 = vpop.f32.mrf.mxu0
    %v1480 = vadd.f32 %v1466, %v1479
    %1481 = vdwg.mxu0
    %v1482 = vperm.slane %v261, 2
    %v1483 = vperm.slane %v262, 2
    %v1484 = vadd.f32 %v1436, %v1482
    %v1485 = vadd.f32 %v1478, %v1483
    %v1486 = vadd.f32 %v1438, %v1482
    %v1487 = vadd.f32 %v1480, %v1483
    %v1488 = vmax.f32 %v1484, 0.0
    %v1489 = vmax.f32 %v1485, 0.0
    %v1490 = vmax.f32 %v1486, 0.0
    %v1491 = vmax.f32 %v1487, 0.0
    %v1492 = vpack.c.bf16 %v1490, %v1488
    %v1493 = vpack.c.bf16 %v1491, %v1489
    %v1494 = vld [vmem:[#allocation17] sm:$0xf]
    %v1495 = vld [vmem:[#allocation17 + $0x4] sm:$0xf]
    %v1496 = vld [vmem:[#allocation17 + $0x8] sm:$0xf]
    %v1497 = vld [vmem:[#allocation17 + $0xc] sm:$0xf]
    %v1498 = vld [vmem:[#allocation17 + $0x10] sm:$0xf]
    %v1499 = vld [vmem:[#allocation17 + $0x14] sm:$0xf]
    %v1500 = vld [vmem:[#allocation17 + $0x18] sm:$0xf]
    %v1501 = vld [vmem:[#allocation17 + $0x1c] sm:$0xf]
    %v1502 = vld [vmem:[#allocation17 + $0x20] sm:$0xf]
    %v1503 = vld [vmem:[#allocation17 + $0x24] sm:$0xf]
    %v1504 = vld [vmem:[#allocation17 + $0x28] sm:$0xf]
    %v1505 = vld [vmem:[#allocation17 + $0x2c] sm:$0xf]
    %v1506 = vld [vmem:[#allocation17 + $0x30] sm:$0xf]
    %v1507 = vld [vmem:[#allocation17 + $0x34] sm:$0xf]
    %v1508 = vld [vmem:[#allocation17 + $0x38] sm:$0xf]
    %v1509 = vld [vmem:[#allocation17 + $0x3c] sm:$0xf]
    %v1510 = vld [vmem:[#allocation17 + $0x40] sm:$0xf]
    %v1511 = vld [vmem:[#allocation17 + $0x44] sm:$0xf]
    %v1512 = vld [vmem:[#allocation17 + $0x48] sm:$0xf]
    %v1513 = vld [vmem:[#allocation17 + $0x4c] sm:$0xf]
    %v1514 = vld [vmem:[#allocation17 + $0x50] sm:$0xf]
    %v1515 = vld [vmem:[#allocation17 + $0x54] sm:$0xf]
    %v1516 = vld [vmem:[#allocation17 + $0x58] sm:$0xf]
    %v1517 = vld [vmem:[#allocation17 + $0x5c] sm:$0xf]
    %v1518 = vld [vmem:[#allocation17 + $0x60] sm:$0xf]
    %v1519 = vld [vmem:[#allocation17 + $0x64] sm:$0xf]
    %v1520 = vld [vmem:[#allocation17 + $0x68] sm:$0xf]
    %v1521 = vld [vmem:[#allocation17 + $0x6c] sm:$0xf]
    %v1522 = vld [vmem:[#allocation17 + $0x70] sm:$0xf]
    %v1523 = vld [vmem:[#allocation17 + $0x74] sm:$0xf]
    %v1524 = vld [vmem:[#allocation17 + $0x78] sm:$0xf]
    %v1525 = vld [vmem:[#allocation17 + $0x7c] sm:$0xf]
    %v1526 = vperm.slane %v261, 3
    %v1559 = vunpack.c.l.b16 %v1494
    %v1560 = vunpack.c.l.b16 %v1495
    %v1561 = vunpack.c.l.b16 %v1496
    %v1562 = vunpack.c.l.b16 %v1497
    %v1563 = vunpack.c.l.b16 %v1498
    %v1564 = vunpack.c.l.b16 %v1499
    %v1565 = vunpack.c.l.b16 %v1500
    %v1566 = vunpack.c.l.b16 %v1501
    %v1567 = vunpack.c.l.b16 %v1502
    %v1568 = vunpack.c.l.b16 %v1503
    %v1569 = vunpack.c.l.b16 %v1504
    %v1570 = vunpack.c.l.b16 %v1505
    %v1571 = vunpack.c.l.b16 %v1506
    %v1572 = vunpack.c.l.b16 %v1507
    %v1573 = vunpack.c.l.b16 %v1508
    %v1574 = vunpack.c.l.b16 %v1509
    %v1575 = vunpack.c.l.b16 %v1510
    %v1576 = vunpack.c.l.b16 %v1511
    %v1577 = vunpack.c.l.b16 %v1512
    %v1578 = vunpack.c.l.b16 %v1513
    %v1579 = vunpack.c.l.b16 %v1514
    %v1580 = vunpack.c.l.b16 %v1515
    %v1581 = vunpack.c.l.b16 %v1516
    %v1582 = vunpack.c.l.b16 %v1517
    %v1583 = vunpack.c.l.b16 %v1518
    %v1584 = vunpack.c.l.b16 %v1519
    %v1585 = vunpack.c.l.b16 %v1520
    %v1586 = vunpack.c.l.b16 %v1521
    %v1587 = vunpack.c.l.b16 %v1522
    %v1588 = vunpack.c.l.b16 %v1523
    %v1589 = vunpack.c.l.b16 %v1524
    %v1590 = vunpack.c.l.b16 %v1525
    %v1591 = vpack.c.b16 %v1560, %v1559
    %v1592 = vpack.c.b16 %v1562, %v1561
    %v1593 = vpack.c.b16 %v1564, %v1563
    %v1594 = vpack.c.b16 %v1566, %v1565
    %v1595 = vpack.c.b16 %v1568, %v1567
    %v1596 = vpack.c.b16 %v1570, %v1569
    %v1597 = vpack.c.b16 %v1572, %v1571
    %v1598 = vpack.c.b16 %v1574, %v1573
    %v1599 = vpack.c.b16 %v1576, %v1575
    %v1600 = vpack.c.b16 %v1578, %v1577
    %v1601 = vpack.c.b16 %v1580, %v1579
    %v1602 = vpack.c.b16 %v1582, %v1581
    %v1603 = vpack.c.b16 %v1584, %v1583
    %v1604 = vpack.c.b16 %v1586, %v1585
    %v1605 = vpack.c.b16 %v1588, %v1587
    %v1606 = vpack.c.b16 %v1590, %v1589
    %1623 = vmatpush.bf16.msra.mxu0 %v1598
    %1624 = vmatpush.bf16.msra.mxu0 %v1597
    %1625 = vmatpush.bf16.msra.mxu0 %v1596
    %1626 = vmatpush.bf16.msra.mxu0 %v1595
    %1627 = vmatpush.bf16.msra.mxu0 %v1594
    %1628 = vmatpush.bf16.msra.mxu0 %v1593
    %1629 = vmatpush.bf16.msra.mxu0 %v1592
    %1630 = vmatpush.bf16.msra.mxu0 %v1591
    %1631 = vmatmul.bf16.gmra.mxu0 %v1492
    %v1632 = vpop.f32.mrf.mxu0
    %v1633 = vadd.f32 %v1526, %v1632
    %v1634 = vpop.f32.mrf.mxu0
    %v1635 = vadd.f32 %v1526, %v1634
    %1636 = vdwg.mxu0
    %1637 = vmatpush.bf16.msra.mxu0 %v1606
    %1638 = vmatpush.bf16.msra.mxu0 %v1605
    %1639 = vmatpush.bf16.msra.mxu0 %v1604
    %1640 = vmatpush.bf16.msra.mxu0 %v1603
    %1641 = vmatpush.bf16.msra.mxu0 %v1602
    %1642 = vmatpush.bf16.msra.mxu0 %v1601
    %1643 = vmatpush.bf16.msra.mxu0 %v1600
    %1644 = vmatpush.bf16.msra.mxu0 %v1599
    %1645 = vmatmul.bf16.gmra.mxu0 %v1493
    %v1646 = vpop.f32.mrf.mxu0
    %v1647 = vadd.f32 %v1633, %v1646
    %v1648 = vpop.f32.mrf.mxu0
    %v1649 = vadd.f32 %v1635, %v1648
    %1650 = vdwg.mxu0
    %v1651 = vmax.f32 %v1647, 0.0
    %v1652 = vmax.f32 %v1649, 0.0
    %v1653 = vpack.c.bf16 %v1652, %v1651
    %v1654 = vld [vmem:[#allocation19] sm:$0xff]
    %v1655 = vld [vmem:[#allocation19 + $0x8] sm:$0xff]
    %v1656 = vld [vmem:[#allocation19 + $0x10] sm:$0xff]
    %v1657 = vld [vmem:[#allocation19 + $0x18] sm:$0xff]
    %v1658 = vld [vmem:[#allocation19 + $0x20] sm:$0xff]
    %v1659 = vld [vmem:[#allocation19 + $0x28] sm:$0xff]
    %v1660 = vld [vmem:[#allocation19 + $0x30] sm:$0xff]
    %v1661 = vld [vmem:[#allocation19 + $0x38] sm:$0xff]
    %v1662 = vld [vmem:[#allocation19 + $0x40] sm:$0xff]
    %v1663 = vld [vmem:[#allocation19 + $0x48] sm:$0xff]
    %v1664 = vld [vmem:[#allocation19 + $0x50] sm:$0xff]
    %v1665 = vld [vmem:[#allocation19 + $0x58] sm:$0xff]
    %v1666 = vld [vmem:[#allocation19 + $0x60] sm:$0xff]
    %v1667 = vld [vmem:[#allocation19 + $0x68] sm:$0xff]
    %v1668 = vld [vmem:[#allocation19 + $0x70] sm:$0xff]
    %v1669 = vld [vmem:[#allocation19 + $0x78] sm:$0xff]
    %v1670 = vld [vmem:[#allocation19 + $0x80] sm:$0xff]
    %v1671 = vld [vmem:[#allocation19 + $0x88] sm:$0xff]
    %v1672 = vld [vmem:[#allocation19 + $0x90] sm:$0xff]
    %v1673 = vld [vmem:[#allocation19 + $0x98] sm:$0xff]
    %v1674 = vld [vmem:[#allocation19 + $0xa0] sm:$0xff]
    %v1675 = vld [vmem:[#allocation19 + $0xa8] sm:$0xff]
    %v1676 = vld [vmem:[#allocation19 + $0xb0] sm:$0xff]
    %v1677 = vld [vmem:[#allocation19 + $0xb8] sm:$0xff]
    %v1678 = vld [vmem:[#allocation19 + $0xc0] sm:$0xff]
    %v1679 = vld [vmem:[#allocation19 + $0xc8] sm:$0xff]
    %v1680 = vld [vmem:[#allocation19 + $0xd0] sm:$0xff]
    %v1681 = vld [vmem:[#allocation19 + $0xd8] sm:$0xff]
    %v1682 = vld [vmem:[#allocation19 + $0xe0] sm:$0xff]
    %v1683 = vld [vmem:[#allocation19 + $0xe8] sm:$0xff]
    %v1684 = vld [vmem:[#allocation19 + $0xf0] sm:$0xff]
    %v1685 = vld [vmem:[#allocation19 + $0xf8] sm:$0xff]
    %v1686 = vperm.slane %v261, 4
    %v1687 = vperm.slane %v262, 4
    %v1688 = vperm.slane %v263, 4
    %v1689 = vperm.slane %v264, 4
    %v1722 = vunpack.c.l.b16 %v1654
    %v1723 = vunpack.c.h.b16 %v1654
    %v1724 = vunpack.c.l.b16 %v1655
    %v1725 = vunpack.c.h.b16 %v1655
    %v1726 = vunpack.c.l.b16 %v1656
    %v1727 = vunpack.c.h.b16 %v1656
    %v1728 = vunpack.c.l.b16 %v1657
    %v1729 = vunpack.c.h.b16 %v1657
    %v1730 = vunpack.c.l.b16 %v1658
    %v1731 = vunpack.c.h.b16 %v1658
    %v1732 = vunpack.c.l.b16 %v1659
    %v1733 = vunpack.c.h.b16 %v1659
    %v1734 = vunpack.c.l.b16 %v1660
    %v1735 = vunpack.c.h.b16 %v1660
    %v1736 = vunpack.c.l.b16 %v1661
    %v1737 = vunpack.c.h.b16 %v1661
    %v1738 = vunpack.c.l.b16 %v1662
    %v1739 = vunpack.c.h.b16 %v1662
    %v1740 = vunpack.c.l.b16 %v1663
    %v1741 = vunpack.c.h.b16 %v1663
    %v1742 = vunpack.c.l.b16 %v1664
    %v1743 = vunpack.c.h.b16 %v1664
    %v1744 = vunpack.c.l.b16 %v1665
    %v1745 = vunpack.c.h.b16 %v1665
    %v1746 = vunpack.c.l.b16 %v1666
    %v1747 = vunpack.c.h.b16 %v1666
    %v1748 = vunpack.c.l.b16 %v1667
    %v1749 = vunpack.c.h.b16 %v1667
    %v1750 = vunpack.c.l.b16 %v1668
    %v1751 = vunpack.c.h.b16 %v1668
    %v1752 = vunpack.c.l.b16 %v1669
    %v1753 = vunpack.c.h.b16 %v1669
    %v1754 = vunpack.c.l.b16 %v1670
    %v1755 = vunpack.c.h.b16 %v1670
    %v1756 = vunpack.c.l.b16 %v1671
    %v1757 = vunpack.c.h.b16 %v1671
    %v1758 = vunpack.c.l.b16 %v1672
    %v1759 = vunpack.c.h.b16 %v1672
    %v1760 = vunpack.c.l.b16 %v1673
    %v1761 = vunpack.c.h.b16 %v1673
    %v1762 = vunpack.c.l.b16 %v1674
    %v1763 = vunpack.c.h.b16 %v1674
    %v1764 = vunpack.c.l.b16 %v1675
    %v1765 = vunpack.c.h.b16 %v1675
    %v1766 = vunpack.c.l.b16 %v1676
    %v1767 = vunpack.c.h.b16 %v1676
    %v1768 = vunpack.c.l.b16 %v1677
    %v1769 = vunpack.c.h.b16 %v1677
    %v1770 = vunpack.c.l.b16 %v1678
    %v1771 = vunpack.c.h.b16 %v1678
    %v1772 = vunpack.c.l.b16 %v1679
    %v1773 = vunpack.c.h.b16 %v1679
    %v1774 = vunpack.c.l.b16 %v1680
    %v1775 = vunpack.c.h.b16 %v1680
    %v1776 = vunpack.c.l.b16 %v1681
    %v1777 = vunpack.c.h.b16 %v1681
    %v1778 = vunpack.c.l.b16 %v1682
    %v1779 = vunpack.c.h.b16 %v1682
    %v1780 = vunpack.c.l.b16 %v1683
    %v1781 = vunpack.c.h.b16 %v1683
    %v1782 = vunpack.c.l.b16 %v1684
    %v1783 = vunpack.c.h.b16 %v1684
    %v1784 = vunpack.c.l.b16 %v1685
    %v1785 = vunpack.c.h.b16 %v1685
    %v1786 = vpack.c.b16 %v1726, %v1722
    %v1787 = vpack.c.b16 %v1727, %v1723
    %v1788 = vpack.c.b16 %v1728, %v1724
    %v1789 = vpack.c.b16 %v1729, %v1725
    %v1790 = vpack.c.b16 %v1734, %v1730
    %v1791 = vpack.c.b16 %v1735, %v1731
    %v1792 = vpack.c.b16 %v1736, %v1732
    %v1793 = vpack.c.b16 %v1737, %v1733
    %v1794 = vpack.c.b16 %v1742, %v1738
    %v1795 = vpack.c.b16 %v1743, %v1739
    %v1796 = vpack.c.b16 %v1744, %v1740
    %v1797 = vpack.c.b16 %v1745, %v1741
    %v1798 = vpack.c.b16 %v1750, %v1746
    %v1799 = vpack.c.b16 %v1751, %v1747
    %v1800 = vpack.c.b16 %v1752, %v1748
    %v1801 = vpack.c.b16 %v1753, %v1749
    %v1802 = vpack.c.b16 %v1758, %v1754
    %v1803 = vpack.c.b16 %v1759, %v1755
    %v1804 = vpack.c.b16 %v1760, %v1756
    %v1805 = vpack.c.b16 %v1761, %v1757
    %v1806 = vpack.c.b16 %v1766, %v1762
    %v1807 = vpack.c.b16 %v1767, %v1763
    %v1808 = vpack.c.b16 %v1768, %v1764
    %v1809 = vpack.c.b16 %v1769, %v1765
    %v1810 = vpack.c.b16 %v1774, %v1770
    %v1811 = vpack.c.b16 %v1775, %v1771
    %v1812 = vpack.c.b16 %v1776, %v1772
    %v1813 = vpack.c.b16 %v1777, %v1773
    %v1814 = vpack.c.b16 %v1782, %v1778
    %v1815 = vpack.c.b16 %v1783, %v1779
    %v1816 = vpack.c.b16 %v1784, %v1780
    %v1817 = vpack.c.b16 %v1785, %v1781
    %1850 = vmatpush.bf16.msra.mxu0 %v1814
    %1851 = vmatpush.bf16.msra.mxu0 %v1810
    %1852 = vmatpush.bf16.msra.mxu0 %v1806
    %1853 = vmatpush.bf16.msra.mxu0 %v1802
    %1854 = vmatpush.bf16.msra.mxu0 %v1798
    %1855 = vmatpush.bf16.msra.mxu0 %v1794
    %1856 = vmatpush.bf16.msra.mxu0 %v1790
    %1857 = vmatpush.bf16.msra.mxu0 %v1786
    %1858 = vmatmul.bf16.gmra.mxu0 %v1653
    %v1859 = vpop.f32.mrf.mxu0
    %v1860 = vadd.f32 %v1686, %v1859
    %v1861 = vpop.f32.mrf.mxu0
    %v1862 = vadd.f32 %v1686, %v1861
    %1863 = vdwg.mxu0
    %1864 = vmatpush.bf16.msra.mxu0 %v1815
    %1865 = vmatpush.bf16.msra.mxu0 %v1811
    %1866 = vmatpush.bf16.msra.mxu0 %v1807
    %1867 = vmatpush.bf16.msra.mxu0 %v1803
    %1868 = vmatpush.bf16.msra.mxu0 %v1799
    %1869 = vmatpush.bf16.msra.mxu0 %v1795
    %1870 = vmatpush.bf16.msra.mxu0 %v1791
    %1871 = vmatpush.bf16.msra.mxu0 %v1787
    %1872 = vmatmul.bf16.gmra.mxu0 %v1653
    %v1873 = vpop.f32.mrf.mxu0
    %v1874 = vadd.f32 %v1687, %v1873
    %v1875 = vpop.f32.mrf.mxu0
    %v1876 = vadd.f32 %v1687, %v1875
    %1877 = vdwg.mxu0
    %1878 = vmatpush.bf16.msra.mxu0 %v1816
    %1879 = vmatpush.bf16.msra.mxu0 %v1812
    %1880 = vmatpush.bf16.msra.mxu0 %v1808
    %1881 = vmatpush.bf16.msra.mxu0 %v1804
    %1882 = vmatpush.bf16.msra.mxu0 %v1800
    %1883 = vmatpush.bf16.msra.mxu0 %v1796
    %1884 = vmatpush.bf16.msra.mxu0 %v1792
    %1885 = vmatpush.bf16.msra.mxu0 %v1788
    %1886 = vmatmul.bf16.gmra.mxu0 %v1653
    %v1887 = vpop.f32.mrf.mxu0
    %v1888 = vadd.f32 %v1688, %v1887
    %v1889 = vpop.f32.mrf.mxu0
    %v1890 = vadd.f32 %v1688, %v1889
    %1891 = vdwg.mxu0
    %1892 = vmatpush.bf16.msra.mxu0 %v1817
    %1893 = vmatpush.bf16.msra.mxu0 %v1813
    %1894 = vmatpush.bf16.msra.mxu0 %v1809
    %1895 = vmatpush.bf16.msra.mxu0 %v1805
    %1896 = vmatpush.bf16.msra.mxu0 %v1801
    %1897 = vmatpush.bf16.msra.mxu0 %v1797
    %1898 = vmatpush.bf16.msra.mxu0 %v1793
    %1899 = vmatpush.bf16.msra.mxu0 %v1789
    %1900 = vmatmul.bf16.gmra.mxu0 %v1653
    %v1901 = vpop.f32.mrf.mxu0
    %v1902 = vadd.f32 %v1689, %v1901
    %v1903 = vpop.f32.mrf.mxu0
    %v1904 = vadd.f32 %v1689, %v1903
    %1905 = vdwg.mxu0
    %v1906 = vmax.f32 %v1860, 0.0
    %v1907 = vmax.f32 %v1874, 0.0
    %v1908 = vmax.f32 %v1888, 0.0
    %v1909 = vmax.f32 %v1902, 0.0
    %v1910 = vmax.f32 %v1862, 0.0
    %v1911 = vmax.f32 %v1876, 0.0
    %v1912 = vmax.f32 %v1890, 0.0
    %v1913 = vmax.f32 %v1904, 0.0
    %v1914 = vpack.c.bf16 %v1910, %v1906
    %v1915 = vpack.c.bf16 %v1911, %v1907
    %v1916 = vpack.c.bf16 %v1912, %v1908
    %v1917 = vpack.c.bf16 %v1913, %v1909
    %v1918 = vld [vmem:[#allocation20] sm:$0xf]
    %v1919 = vld [vmem:[#allocation20 + $0x4] sm:$0xf]
    %v1920 = vld [vmem:[#allocation20 + $0x8] sm:$0xf]
    %v1921 = vld [vmem:[#allocation20 + $0xc] sm:$0xf]
    %v1922 = vld [vmem:[#allocation20 + $0x10] sm:$0xf]
    %v1923 = vld [vmem:[#allocation20 + $0x14] sm:$0xf]
    %v1924 = vld [vmem:[#allocation20 + $0x18] sm:$0xf]
    %v1925 = vld [vmem:[#allocation20 + $0x1c] sm:$0xf]
    %v1926 = vld [vmem:[#allocation20 + $0x20] sm:$0xf]
    %v1927 = vld [vmem:[#allocation20 + $0x24] sm:$0xf]
    %v1928 = vld [vmem:[#allocation20 + $0x28] sm:$0xf]
    %v1929 = vld [vmem:[#allocation20 + $0x2c] sm:$0xf]
    %v1930 = vld [vmem:[#allocation20 + $0x30] sm:$0xf]
    %v1931 = vld [vmem:[#allocation20 + $0x34] sm:$0xf]
    %v1932 = vld [vmem:[#allocation20 + $0x38] sm:$0xf]
    %v1933 = vld [vmem:[#allocation20 + $0x3c] sm:$0xf]
    %v1934 = vld [vmem:[#allocation20 + $0x40] sm:$0xf]
    %v1935 = vld [vmem:[#allocation20 + $0x44] sm:$0xf]
    %v1936 = vld [vmem:[#allocation20 + $0x48] sm:$0xf]
    %v1937 = vld [vmem:[#allocation20 + $0x4c] sm:$0xf]
    %v1938 = vld [vmem:[#allocation20 + $0x50] sm:$0xf]
    %v1939 = vld [vmem:[#allocation20 + $0x54] sm:$0xf]
    %v1940 = vld [vmem:[#allocation20 + $0x58] sm:$0xf]
    %v1941 = vld [vmem:[#allocation20 + $0x5c] sm:$0xf]
    %v1942 = vld [vmem:[#allocation20 + $0x60] sm:$0xf]
    %v1943 = vld [vmem:[#allocation20 + $0x64] sm:$0xf]
    %v1944 = vld [vmem:[#allocation20 + $0x68] sm:$0xf]
    %v1945 = vld [vmem:[#allocation20 + $0x6c] sm:$0xf]
    %v1946 = vld [vmem:[#allocation20 + $0x70] sm:$0xf]
    %v1947 = vld [vmem:[#allocation20 + $0x74] sm:$0xf]
    %v1948 = vld [vmem:[#allocation20 + $0x78] sm:$0xf]
    %v1949 = vld [vmem:[#allocation20 + $0x7c] sm:$0xf]
    %v1950 = vld [vmem:[#allocation20 + $0x80] sm:$0xf]
    %v1951 = vld [vmem:[#allocation20 + $0x84] sm:$0xf]
    %v1952 = vld [vmem:[#allocation20 + $0x88] sm:$0xf]
    %v1953 = vld [vmem:[#allocation20 + $0x8c] sm:$0xf]
    %v1954 = vld [vmem:[#allocation20 + $0x90] sm:$0xf]
    %v1955 = vld [vmem:[#allocation20 + $0x94] sm:$0xf]
    %v1956 = vld [vmem:[#allocation20 + $0x98] sm:$0xf]
    %v1957 = vld [vmem:[#allocation20 + $0x9c] sm:$0xf]
    %v1958 = vld [vmem:[#allocation20 + $0xa0] sm:$0xf]
    %v1959 = vld [vmem:[#allocation20 + $0xa4] sm:$0xf]
    %v1960 = vld [vmem:[#allocation20 + $0xa8] sm:$0xf]
    %v1961 = vld [vmem:[#allocation20 + $0xac] sm:$0xf]
    %v1962 = vld [vmem:[#allocation20 + $0xb0] sm:$0xf]
    %v1963 = vld [vmem:[#allocation20 + $0xb4] sm:$0xf]
    %v1964 = vld [vmem:[#allocation20 + $0xb8] sm:$0xf]
    %v1965 = vld [vmem:[#allocation20 + $0xbc] sm:$0xf]
    %v1966 = vld [vmem:[#allocation20 + $0xc0] sm:$0xf]
    %v1967 = vld [vmem:[#allocation20 + $0xc4] sm:$0xf]
    %v1968 = vld [vmem:[#allocation20 + $0xc8] sm:$0xf]
    %v1969 = vld [vmem:[#allocation20 + $0xcc] sm:$0xf]
    %v1970 = vld [vmem:[#allocation20 + $0xd0] sm:$0xf]
    %v1971 = vld [vmem:[#allocation20 + $0xd4] sm:$0xf]
    %v1972 = vld [vmem:[#allocation20 + $0xd8] sm:$0xf]
    %v1973 = vld [vmem:[#allocation20 + $0xdc] sm:$0xf]
    %v1974 = vld [vmem:[#allocation20 + $0xe0] sm:$0xf]
    %v1975 = vld [vmem:[#allocation20 + $0xe4] sm:$0xf]
    %v1976 = vld [vmem:[#allocation20 + $0xe8] sm:$0xf]
    %v1977 = vld [vmem:[#allocation20 + $0xec] sm:$0xf]
    %v1978 = vld [vmem:[#allocation20 + $0xf0] sm:$0xf]
    %v1979 = vld [vmem:[#allocation20 + $0xf4] sm:$0xf]
    %v1980 = vld [vmem:[#allocation20 + $0xf8] sm:$0xf]
    %v1981 = vld [vmem:[#allocation20 + $0xfc] sm:$0xf]
    %v1982 = vperm.slane %v261, 5
    %v2047 = vunpack.c.l.b16 %v1918
    %v2048 = vunpack.c.l.b16 %v1919
    %v2049 = vunpack.c.l.b16 %v1920
    %v2050 = vunpack.c.l.b16 %v1921
    %v2051 = vunpack.c.l.b16 %v1922
    %v2052 = vunpack.c.l.b16 %v1923
    %v2053 = vunpack.c.l.b16 %v1924
    %v2054 = vunpack.c.l.b16 %v1925
    %v2055 = vunpack.c.l.b16 %v1926
    %v2056 = vunpack.c.l.b16 %v1927
    %v2057 = vunpack.c.l.b16 %v1928
    %v2058 = vunpack.c.l.b16 %v1929
    %v2059 = vunpack.c.l.b16 %v1930
    %v2060 = vunpack.c.l.b16 %v1931
    %v2061 = vunpack.c.l.b16 %v1932
    %v2062 = vunpack.c.l.b16 %v1933
    %v2063 = vunpack.c.l.b16 %v1934
    %v2064 = vunpack.c.l.b16 %v1935
    %v2065 = vunpack.c.l.b16 %v1936
    %v2066 = vunpack.c.l.b16 %v1937
    %v2067 = vunpack.c.l.b16 %v1938
    %v2068 = vunpack.c.l.b16 %v1939
    %v2069 = vunpack.c.l.b16 %v1940
    %v2070 = vunpack.c.l.b16 %v1941
    %v2071 = vunpack.c.l.b16 %v1942
    %v2072 = vunpack.c.l.b16 %v1943
    %v2073 = vunpack.c.l.b16 %v1944
    %v2074 = vunpack.c.l.b16 %v1945
    %v2075 = vunpack.c.l.b16 %v1946
    %v2076 = vunpack.c.l.b16 %v1947
    %v2077 = vunpack.c.l.b16 %v1948
    %v2078 = vunpack.c.l.b16 %v1949
    %v2079 = vunpack.c.l.b16 %v1950
    %v2080 = vunpack.c.l.b16 %v1951
    %v2081 = vunpack.c.l.b16 %v1952
    %v2082 = vunpack.c.l.b16 %v1953
    %v2083 = vunpack.c.l.b16 %v1954
    %v2084 = vunpack.c.l.b16 %v1955
    %v2085 = vunpack.c.l.b16 %v1956
    %v2086 = vunpack.c.l.b16 %v1957
    %v2087 = vunpack.c.l.b16 %v1958
    %v2088 = vunpack.c.l.b16 %v1959
    %v2089 = vunpack.c.l.b16 %v1960
    %v2090 = vunpack.c.l.b16 %v1961
    %v2091 = vunpack.c.l.b16 %v1962
    %v2092 = vunpack.c.l.b16 %v1963
    %v2093 = vunpack.c.l.b16 %v1964
    %v2094 = vunpack.c.l.b16 %v1965
    %v2095 = vunpack.c.l.b16 %v1966
    %v2096 = vunpack.c.l.b16 %v1967
    %v2097 = vunpack.c.l.b16 %v1968
    %v2098 = vunpack.c.l.b16 %v1969
    %v2099 = vunpack.c.l.b16 %v1970
    %v2100 = vunpack.c.l.b16 %v1971
    %v2101 = vunpack.c.l.b16 %v1972
    %v2102 = vunpack.c.l.b16 %v1973
    %v2103 = vunpack.c.l.b16 %v1974
    %v2104 = vunpack.c.l.b16 %v1975
    %v2105 = vunpack.c.l.b16 %v1976
    %v2106 = vunpack.c.l.b16 %v1977
    %v2107 = vunpack.c.l.b16 %v1978
    %v2108 = vunpack.c.l.b16 %v1979
    %v2109 = vunpack.c.l.b16 %v1980
    %v2110 = vunpack.c.l.b16 %v1981
    %v2111 = vpack.c.b16 %v2048, %v2047
    %v2112 = vpack.c.b16 %v2050, %v2049
    %v2113 = vpack.c.b16 %v2052, %v2051
    %v2114 = vpack.c.b16 %v2054, %v2053
    %v2115 = vpack.c.b16 %v2056, %v2055
    %v2116 = vpack.c.b16 %v2058, %v2057
    %v2117 = vpack.c.b16 %v2060, %v2059
    %v2118 = vpack.c.b16 %v2062, %v2061
    %v2119 = vpack.c.b16 %v2064, %v2063
    %v2120 = vpack.c.b16 %v2066, %v2065
    %v2121 = vpack.c.b16 %v2068, %v2067
    %v2122 = vpack.c.b16 %v2070, %v2069
    %v2123 = vpack.c.b16 %v2072, %v2071
    %v2124 = vpack.c.b16 %v2074, %v2073
    %v2125 = vpack.c.b16 %v2076, %v2075
    %v2126 = vpack.c.b16 %v2078, %v2077
    %v2127 = vpack.c.b16 %v2080, %v2079
    %v2128 = vpack.c.b16 %v2082, %v2081
    %v2129 = vpack.c.b16 %v2084, %v2083
    %v2130 = vpack.c.b16 %v2086, %v2085
    %v2131 = vpack.c.b16 %v2088, %v2087
    %v2132 = vpack.c.b16 %v2090, %v2089
    %v2133 = vpack.c.b16 %v2092, %v2091
    %v2134 = vpack.c.b16 %v2094, %v2093
    %v2135 = vpack.c.b16 %v2096, %v2095
    %v2136 = vpack.c.b16 %v2098, %v2097
    %v2137 = vpack.c.b16 %v2100, %v2099
    %v2138 = vpack.c.b16 %v2102, %v2101
    %v2139 = vpack.c.b16 %v2104, %v2103
    %v2140 = vpack.c.b16 %v2106, %v2105
    %v2141 = vpack.c.b16 %v2108, %v2107
    %v2142 = vpack.c.b16 %v2110, %v2109
    %2175 = vmatpush.bf16.msra.mxu0 %v2118
    %2176 = vmatpush.bf16.msra.mxu0 %v2117
    %2177 = vmatpush.bf16.msra.mxu0 %v2116
    %2178 = vmatpush.bf16.msra.mxu0 %v2115
    %2179 = vmatpush.bf16.msra.mxu0 %v2114
    %2180 = vmatpush.bf16.msra.mxu0 %v2113
    %2181 = vmatpush.bf16.msra.mxu0 %v2112
    %2182 = vmatpush.bf16.msra.mxu0 %v2111
    %2183 = vmatmul.bf16.gmra.mxu0 %v1914
    %v2184 = vpop.f32.mrf.mxu0
    %v2185 = vadd.f32 %v1982, %v2184
    %v2186 = vpop.f32.mrf.mxu0
    %v2187 = vadd.f32 %v1982, %v2186
    %2188 = vdwg.mxu0
    %2189 = vmatpush.bf16.msra.mxu0 %v2126
    %2190 = vmatpush.bf16.msra.mxu0 %v2125
    %2191 = vmatpush.bf16.msra.mxu0 %v2124
    %2192 = vmatpush.bf16.msra.mxu0 %v2123
    %2193 = vmatpush.bf16.msra.mxu0 %v2122
    %2194 = vmatpush.bf16.msra.mxu0 %v2121
    %2195 = vmatpush.bf16.msra.mxu0 %v2120
    %2196 = vmatpush.bf16.msra.mxu0 %v2119
    %2197 = vmatmul.bf16.gmra.mxu0 %v1915
    %v2198 = vpop.f32.mrf.mxu0
    %v2199 = vadd.f32 %v2185, %v2198
    %v2200 = vpop.f32.mrf.mxu0
    %v2201 = vadd.f32 %v2187, %v2200
    %2202 = vdwg.mxu0
    %2203 = vmatpush.bf16.msra.mxu0 %v2134
    %2204 = vmatpush.bf16.msra.mxu0 %v2133
    %2205 = vmatpush.bf16.msra.mxu0 %v2132
    %2206 = vmatpush.bf16.msra.mxu0 %v2131
    %2207 = vmatpush.bf16.msra.mxu0 %v2130
    %2208 = vmatpush.bf16.msra.mxu0 %v2129
    %2209 = vmatpush.bf16.msra.mxu0 %v2128
    %2210 = vmatpush.bf16.msra.mxu0 %v2127
    %2211 = vmatmul.bf16.gmra.mxu0 %v1916
    %v2212 = vpop.f32.mrf.mxu0
    %v2213 = vadd.f32 %v2199, %v2212
    %v2214 = vpop.f32.mrf.mxu0
    %v2215 = vadd.f32 %v2201, %v2214
    %2216 = vdwg.mxu0
    %2217 = vmatpush.bf16.msra.mxu0 %v2142
    %2218 = vmatpush.bf16.msra.mxu0 %v2141
    %2219 = vmatpush.bf16.msra.mxu0 %v2140
    %2220 = vmatpush.bf16.msra.mxu0 %v2139
    %2221 = vmatpush.bf16.msra.mxu0 %v2138
    %2222 = vmatpush.bf16.msra.mxu0 %v2137
    %2223 = vmatpush.bf16.msra.mxu0 %v2136
    %2224 = vmatpush.bf16.msra.mxu0 %v2135
    %2225 = vmatmul.bf16.gmra.mxu0 %v1917
    %v2226 = vpop.f32.mrf.mxu0
    %v2227 = vadd.f32 %v2213, %v2226
    %v2228 = vpop.f32.mrf.mxu0
    %v2229 = vadd.f32 %v2215, %v2228
    %2230 = vdwg.mxu0
    %v2231 = vmax.f32 %v2227, 0.0
    %v2232 = vmax.f32 %v2229, 0.0
    %v2233 = vpack.c.bf16 %v2232, %v2231
    %v2234 = vld [vmem:[%s16] sm:$0xf]
    %v2235 = vld [vmem:[%s16 + $0x4] sm:$0xf]
    %v2236 = vld [vmem:[%s16 + $0x8] sm:$0xf]
    %v2237 = vld [vmem:[%s16 + $0xc] sm:$0xf]
    %v2238 = vld [vmem:[%s16 + $0x10] sm:$0xf]
    %v2239 = vld [vmem:[%s16 + $0x14] sm:$0xf]
    %v2240 = vld [vmem:[%s16 + $0x18] sm:$0xf]
    %v2241 = vld [vmem:[%s16 + $0x1c] sm:$0xf]
    %v2242 = vld [vmem:[%s16 + $0x20] sm:$0xf]
    %v2243 = vld [vmem:[%s16 + $0x24] sm:$0xf]
    %v2244 = vld [vmem:[%s16 + $0x28] sm:$0xf]
    %v2245 = vld [vmem:[%s16 + $0x2c] sm:$0xf]
    %v2246 = vld [vmem:[%s16 + $0x30] sm:$0xf]
    %v2247 = vld [vmem:[%s16 + $0x34] sm:$0xf]
    %v2248 = vld [vmem:[%s16 + $0x38] sm:$0xf]
    %v2249 = vld [vmem:[%s16 + $0x3c] sm:$0xf]
    %v2250 = vperm.slane %v261, 6
    %v2267 = vunpack.c.l.b16 %v2234
    %v2268 = vunpack.c.l.b16 %v2235
    %v2269 = vunpack.c.l.b16 %v2236
    %v2270 = vunpack.c.l.b16 %v2237
    %v2271 = vunpack.c.l.b16 %v2238
    %v2272 = vunpack.c.l.b16 %v2239
    %v2273 = vunpack.c.l.b16 %v2240
    %v2274 = vunpack.c.l.b16 %v2241
    %v2275 = vunpack.c.l.b16 %v2242
    %v2276 = vunpack.c.l.b16 %v2243
    %v2277 = vunpack.c.l.b16 %v2244
    %v2278 = vunpack.c.l.b16 %v2245
    %v2279 = vunpack.c.l.b16 %v2246
    %v2280 = vunpack.c.l.b16 %v2247
    %v2281 = vunpack.c.l.b16 %v2248
    %v2282 = vunpack.c.l.b16 %v2249
    %v2283 = vpack.c.b16 %v2268, %v2267
    %v2284 = vpack.c.b16 %v2270, %v2269
    %v2285 = vpack.c.b16 %v2272, %v2271
    %v2286 = vpack.c.b16 %v2274, %v2273
    %v2287 = vpack.c.b16 %v2276, %v2275
    %v2288 = vpack.c.b16 %v2278, %v2277
    %v2289 = vpack.c.b16 %v2280, %v2279
    %v2290 = vpack.c.b16 %v2282, %v2281
    %2299 = vmatpush.bf16.msra.mxu0 %v2290
    %2300 = vmatpush.bf16.msra.mxu0 %v2289
    %2301 = vmatpush.bf16.msra.mxu0 %v2288
    %2302 = vmatpush.bf16.msra.mxu0 %v2287
    %2303 = vmatpush.bf16.msra.mxu0 %v2286
    %2304 = vmatpush.bf16.msra.mxu0 %v2285
    %2305 = vmatpush.bf16.msra.mxu0 %v2284
    %2306 = vmatpush.bf16.msra.mxu0 %v2283
    %2307 = vmatmul.bf16.gmra.mxu0 %v2233
    %v2308 = vpop.f32.mrf.mxu0
    %v2309 = vadd.f32 %v2250, %v2308
    %v2310 = vpop.f32.mrf.mxu0
    %v2311 = vadd.f32 %v2250, %v2310
    %2312 = vdwg.mxu0
    %2313 = vst [vmem:[#allocation23] sm:$0xff] %v2309
    %2314 = vst [vmem:[#allocation23 + $0x8] sm:$0xff] %v2311
    // Predicated region
    $region126: #{tpu_custom_call.1} parent=1 // pred_check
      _
    $region127: #{tpu_custom_call.1} parent=1 // pred_check_branch
      %2316 = sbr.rel (0) target = $region129
    $region128: #{tpu_custom_call.1} parent=1 // pred_region
      %2318 = vsyncadd [#allocation4], 0
      %s2319 = sshll.u32 [#allocation23], 4
      %s2320 = int_to_ptr.vmem [resolvable:$true] %s2319
      %s2321 = sshll.u32 %s18, 4
      %s2322 = int_to_ptr.hbm [resolvable:$true] %s2321
      %2327 = dma.vmem_to_hbm [thread:$0]  %s2320, 256, %s2322, [#allocation4], 128, 128, 8
    $region129: #{tpu_custom_call.1} parent=1 // pred_fallthru
      _
    // Predicated region
    $region130: #{tpu_custom_call.1} parent=1 // pred_check
      _
    $region131: #{tpu_custom_call.1} parent=1 // pred_check_branch
      %2329 = sbr.rel (0) target = $region133
    $region132: #{tpu_custom_call.1} parent=1 // pred_region
      %2331 = dma.done [#allocation4], 256
    $region133: #{tpu_custom_call.1} parent=1 // pred_fallthru
      _
    %2332 = vsyncpa [#allocation3], 1
    %2333 = vsyncpa [#allocation6], 1
    %2334 = vsyncpa [#allocation9], 1
    %2335 = vsyncpa [#allocation12], 1
    %2336 = vsyncpa [#allocation15], 1
    %2337 = vsyncpa [#allocation18], 1
    %2338 = vsyncpa [#allocation21], 1
    %2339 = vsyncpa [#allocation4], 1

</llo_original>
